<compile_context>
chip_gen: v6e
topology: v6e:2x2x1
jax: 0.10.0
libtpu: 0.0.40
codegen_flags: <defaults>
</compile_context>

<pallas_src>
import functools

import jax
import jax.numpy as jnp
from jax.experimental import pallas as pl
from jax.experimental.pallas import tpu as pltpu

IN_DIM, HID_DIM, OUT_DIM = 1000, 400, 200
IN_PAD, HID_PAD, OUT_PAD = 1024, 512, 256   # lane-aligned (multiples of 128)


def _round_up(n, m):
    return ((n + m - 1) // m) * m


def head_projection_kernel(x_ref, w1_ref, b1_ref, w2_ref, b2_ref, o_ref):
    # fc1 + ReLU  (bf16 inputs, f32 accumulation on the MXU)
    h = jnp.dot(x_ref[...], w1_ref[...], preferred_element_type=jnp.float32)
    h = jnp.maximum(h + b1_ref[...], 0.0)          # (TB, 512) + (1, 512)
    # fc2 + ReLU
    out = jnp.dot(h.astype(w2_ref.dtype), w2_ref[...],
                  preferred_element_type=jnp.float32)
    out = jnp.maximum(out + b2_ref[...], 0.0)      # (TB, 256) + (1, 256)
    o_ref[...] = out.astype(o_ref.dtype)


def prepare_params(w1, b1, w2, b2):
    """Pad feature dims to lane multiples and cast weights to bf16 (once)."""
    w1p = jnp.zeros((IN_PAD, HID_PAD), jnp.bfloat16)
    w1p = w1p.at[:IN_DIM, :HID_DIM].set(w1.astype(jnp.bfloat16))
    b1p = jnp.zeros((1, HID_PAD), jnp.float32).at[:, :HID_DIM].set(
        b1.reshape(1, HID_DIM).astype(jnp.float32))
    w2p = jnp.zeros((HID_PAD, OUT_PAD), jnp.bfloat16)
    w2p = w2p.at[:HID_DIM, :OUT_DIM].set(w2.astype(jnp.bfloat16))
    b2p = jnp.zeros((1, OUT_PAD), jnp.float32).at[:, :OUT_DIM].set(
        b2.reshape(1, OUT_DIM).astype(jnp.float32))
    return w1p, b1p, w2p, b2p


@functools.partial(jax.jit, static_argnames=("tile_b",))
def head_projection(x, w1p, b1p, w2p, b2p, tile_b=128):
    """x: (B, 1000) f32/bf16. Params are the pre-padded bf16/f32 arrays."""
    B = x.shape[0]
    out_dtype = x.dtype

    # Batch tile: up to `tile_b` rows per grid step (sublane-aligned).
    tb = min(tile_b, _round_up(B, 8))
    Bp = _round_up(B, tb)

    # Pad batch + feature dims, cast activations to bf16.
    xp = jnp.zeros((Bp, IN_PAD), jnp.bfloat16)
    xp = xp.at[:B, :IN_DIM].set(x.astype(jnp.bfloat16))

    grid = (Bp // tb,)
    flops = 2 * Bp * (IN_PAD * HID_PAD + HID_PAD * OUT_PAD)
    bytes_accessed = (
        xp.size * xp.dtype.itemsize
        + w1p.size * w1p.dtype.itemsize + w2p.size * w2p.dtype.itemsize
        + b1p.size * b1p.dtype.itemsize + b2p.size * b2p.dtype.itemsize
        + Bp * OUT_PAD * jnp.dtype(out_dtype).itemsize)

    out_padded = pl.pallas_call(
        head_projection_kernel,
        out_shape=jax.ShapeDtypeStruct((Bp, OUT_PAD), out_dtype),
        grid_spec=pltpu.PrefetchScalarGridSpec(
            num_scalar_prefetch=0,
            grid=grid,
            in_specs=[
                # x: one batch tile per step (auto-pipelined).
                pl.BlockSpec((tb, IN_PAD), lambda i: (i, 0)),
                # Weights / biases: constant block -> stay VMEM-resident.
                pl.BlockSpec((IN_PAD, HID_PAD), lambda i: (0, 0)),
                pl.BlockSpec((1, HID_PAD), lambda i: (0, 0)),
                pl.BlockSpec((HID_PAD, OUT_PAD), lambda i: (0, 0)),
                pl.BlockSpec((1, OUT_PAD), lambda i: (0, 0)),
            ],
            out_specs=pl.BlockSpec((tb, OUT_PAD), lambda i: (i, 0)),
        ),
        compiler_params=pltpu.CompilerParams(
            dimension_semantics=("parallel",),   # batch tiles across TCs (v7x)
        ),
        cost_estimate=pl.CostEstimate(
            flops=flops, transcendentals=0, bytes_accessed=bytes_accessed),
    )(xp, w1p, b1p, w2p, b2p)

    # Slice away batch + lane padding.
    return out_padded[:B, :OUT_DIM]


def init_params(key):
    """Mirror nn.Linear's uniform(-1/sqrt(fan_in), 1/sqrt(fan_in)) init (f32)."""
    k1, k2, k3, k4 = jax.random.split(key, 4)
    bound1 = 1.0 / jnp.sqrt(IN_DIM)
    bound2 = 1.0 / jnp.sqrt(HID_DIM)
    # Stored as (in, out) — i.e. the transpose of PyTorch's (out, in) weight.
    w1 = jax.random.uniform(k1, (IN_DIM, HID_DIM), jnp.float32, -bound1, bound1)
    b1 = jax.random.uniform(k2, (HID_DIM,), jnp.float32, -bound1, bound1)
    w2 = jax.random.uniform(k3, (HID_DIM, OUT_DIM), jnp.float32, -bound2, bound2)
    b2 = jax.random.uniform(k4, (OUT_DIM,), jnp.float32, -bound2, bound2)
    return w1, b1, w2, b2


def head_projection_ref(x, w1, b1, w2, b2):
    """Reference with the same bf16-input / f32-accumulate numerics."""
    xb = x.astype(jnp.bfloat16)
    h = jnp.dot(xb, w1.astype(jnp.bfloat16), preferred_element_type=jnp.float32)
    h = jnp.maximum(h + b1.reshape(1, -1), 0.0)
    o = jnp.dot(h.astype(jnp.bfloat16), w2.astype(jnp.bfloat16),
                preferred_element_type=jnp.float32)
    o = jnp.maximum(o + b2.reshape(1, -1), 0.0)
    return o.astype(x.dtype)


if __name__ == "__main__":
    key = jax.random.PRNGKey(0)
    kx, kx2, kp = jax.random.split(key, 3)

    w1, b1, w2, b2 = init_params(kp)
    w1p, b1p, w2p, b2p = prepare_params(w1, b1, w2, b2)

    # Small batch (single grid step).
    B = 8
    x = jax.random.normal(kx, (B, IN_DIM), jnp.float32)
    out = jax.block_until_ready(head_projection(x, w1p, b1p, w2p, b2p))
    ref = head_projection_ref(x, w1, b1, w2, b2)
    assert out.shape == (B, OUT_DIM)
    assert jnp.allclose(out, ref, atol=5e-3, rtol=5e-3)

    # Larger, non-aligned batch (exercises batch tiling + row padding).
    B2 = 200
    x2 = jax.random.normal(kx2, (B2, IN_DIM), jnp.float32)
    out2 = jax.block_until_ready(head_projection(x2, w1p, b1p, w2p, b2p))
    ref2 = head_projection_ref(x2, w1, b1, w2, b2)
    assert out2.shape == (B2, OUT_DIM)
    assert jnp.allclose(out2, ref2, atol=5e-3, rtol=5e-3)

    print("KERNEL_OK")
</pallas_src>

<mosaic_0001>
module attributes {stable_mosaic.version = 11 : i64} {
  func.func @head_projection_kernel(%arg0: i32, %arg1: memref<8x1024xbf16, #tpu.memory_space<vmem>>, %arg2: memref<1024x512xbf16, #tpu.memory_space<vmem>>, %arg3: memref<1x512xf32, #tpu.memory_space<vmem>>, %arg4: memref<512x256xbf16, #tpu.memory_space<vmem>>, %arg5: memref<1x256xf32, #tpu.memory_space<vmem>>, %arg6: memref<8x256xf32, #tpu.memory_space<vmem>>) attributes {dimension_semantics = [#tpu.dimension_semantics<parallel>], iteration_bounds = array<i64: 1>, scalar_prefetch = 0 : i64, scratch_operands = 0 : i64, tpu.core_type = #tpu.core_type<tc>, window_params = [{transform_indices = @transform_0, window_bounds = array<i64: 8, 1024>}, {pipeline_mode = #tpu.pipeline_mode<synchronous>, transform_indices = @transform_1, window_bounds = array<i64: 1024, 512>}, {pipeline_mode = #tpu.pipeline_mode<synchronous>, transform_indices = @transform_2, window_bounds = array<i64: 1, 512>}, {pipeline_mode = #tpu.pipeline_mode<synchronous>, transform_indices = @transform_3, window_bounds = array<i64: 512, 256>}, {pipeline_mode = #tpu.pipeline_mode<synchronous>, transform_indices = @transform_4, window_bounds = array<i64: 1, 256>}, {transform_indices = @transform_5, window_bounds = array<i64: 8, 256>}]} {
    %c0 = arith.constant 0 : index
    %c0_0 = arith.constant 0 : index
    %0 = vector.load %arg1[%c0, %c0_0] : memref<8x1024xbf16, #tpu.memory_space<vmem>>, vector<8x1024xbf16>
    %c0_1 = arith.constant 0 : index
    %c0_2 = arith.constant 0 : index
    %1 = vector.load %arg2[%c0_1, %c0_2] : memref<1024x512xbf16, #tpu.memory_space<vmem>>, vector<1024x512xbf16>
    %cst = arith.constant dense<0.000000e+00> : vector<8x512xf32>
    %2 = tpu.matmul %0, %1, %cst {dimension_numbers = #tpu.dot_dimension_numbers<[1], [0], [0], [1], [0, 0, 1, 1], [], []>} : vector<8x1024xbf16>, vector<1024x512xbf16>, vector<8x512xf32> -> vector<8x512xf32>
    %c0_3 = arith.constant 0 : index
    %c0_4 = arith.constant 0 : index
    %3 = vector.load %arg3[%c0_3, %c0_4] : memref<1x512xf32, #tpu.memory_space<vmem>>, vector<1x512xf32>
    %4 = vector.broadcast %3 : vector<1x512xf32> to vector<8x512xf32>
    %5 = arith.addf %2, %4 : vector<8x512xf32>
    %cst_5 = arith.constant 0.000000e+00 : f32
    %6 = vector.broadcast %cst_5 : f32 to vector<8x512xf32>
    %7 = arith.maximumf %5, %6 : vector<8x512xf32>
    %8 = arith.truncf %7 : vector<8x512xf32> to vector<8x512xbf16>
    %c0_6 = arith.constant 0 : index
    %c0_7 = arith.constant 0 : index
    %9 = vector.load %arg4[%c0_6, %c0_7] : memref<512x256xbf16, #tpu.memory_space<vmem>>, vector<512x256xbf16>
    %cst_8 = arith.constant dense<0.000000e+00> : vector<8x256xf32>
    %10 = tpu.matmul %8, %9, %cst_8 {dimension_numbers = #tpu.dot_dimension_numbers<[1], [0], [0], [1], [0, 0, 1, 1], [], []>} : vector<8x512xbf16>, vector<512x256xbf16>, vector<8x256xf32> -> vector<8x256xf32>
    %c0_9 = arith.constant 0 : index
    %c0_10 = arith.constant 0 : index
    %11 = vector.load %arg5[%c0_9, %c0_10] : memref<1x256xf32, #tpu.memory_space<vmem>>, vector<1x256xf32>
    %12 = vector.broadcast %11 : vector<1x256xf32> to vector<8x256xf32>
    %13 = arith.addf %10, %12 : vector<8x256xf32>
    %cst_11 = arith.constant 0.000000e+00 : f32
    %14 = vector.broadcast %cst_11 : f32 to vector<8x256xf32>
    %15 = arith.maximumf %13, %14 : vector<8x256xf32>
    %c0_12 = arith.constant 0 : index
    %c0_13 = arith.constant 0 : index
    %16 = vector.load %arg6[%c0_12, %c0_13] : memref<8x256xf32, #tpu.memory_space<vmem>>, vector<8x256xf32>
    tpu.vector_store %arg6[%c0_12, %c0_13], %15 {strides = array<i32>} : memref<8x256xf32, #tpu.memory_space<vmem>>, vector<8x256xf32>,
    return
  }
  func.func @transform_0(%arg0: i32) -> (i32, i32) {
    %c0_i32 = arith.constant 0 : i32
    %c0_i32_0 = arith.constant 0 : i32
    return %arg0, %c0_i32 : i32, i32
  }
  func.func @transform_1(%arg0: i32) -> (i32, i32) {
    %c0_i32 = arith.constant 0 : i32
    %c0_i32_0 = arith.constant 0 : i32
    %c0_i32_1 = arith.constant 0 : i32
    return %c0_i32, %c0_i32_0 : i32, i32
  }
  func.func @transform_2(%arg0: i32) -> (i32, i32) {
    %c0_i32 = arith.constant 0 : i32
    %c0_i32_0 = arith.constant 0 : i32
    %c0_i32_1 = arith.constant 0 : i32
    return %c0_i32, %c0_i32_0 : i32, i32
  }
  func.func @transform_3(%arg0: i32) -> (i32, i32) {
    %c0_i32 = arith.constant 0 : i32
    %c0_i32_0 = arith.constant 0 : i32
    %c0_i32_1 = arith.constant 0 : i32
    return %c0_i32, %c0_i32_0 : i32, i32
  }
  func.func @transform_4(%arg0: i32) -> (i32, i32) {
    %c0_i32 = arith.constant 0 : i32
    %c0_i32_0 = arith.constant 0 : i32
    %c0_i32_1 = arith.constant 0 : i32
    return %c0_i32, %c0_i32_0 : i32, i32
  }
  func.func @transform_5(%arg0: i32) -> (i32, i32) {
    %c0_i32 = arith.constant 0 : i32
    %c0_i32_0 = arith.constant 0 : i32
    return %arg0, %c0_i32 : i32, i32
  }
}

</mosaic_0001>

<llo_original>
// kernel: head_projection.1
$region0: #{head_projection.1}
  #allocation0 [shape = 'u32[]', space=smem, size = 0x4, offset = 0x4, fixed_abs, tag = 'smem constant byte address 0x4 - core index']
  #allocation1 [shape = 'u32[144,128]{1,0:T(1,128)}', space=vmem, size = 0x12000, scoped, tag = 'internal scratch']
  %s0 = inlined_call_operand.vmem [shape: bf16[8,1024], index: 0, kind: input, shape index: {}]
  %s1 = inlined_call_operand.hbm [shape: bf16[1024,512], index: 1, kind: input, shape index: {}]
  %s2 = inlined_call_operand.vmem [shape: f32[1,512], index: 2, kind: input, shape index: {}]
  %s3 = inlined_call_operand.hbm [shape: bf16[512,256], index: 3, kind: input, shape index: {}]
  %s4 = inlined_call_operand.vmem [shape: f32[1,256], index: 4, kind: input, shape index: {}]
  %s5 = inlined_call_operand.hbm [shape: f32[8,256], index: 5, kind: output, shape index: {}]
  %s6 = sld [smem:[#allocation0]]
  $region38: #{head_projection.1} parent=0
    _
  %s8 = ssub.s32 1, %s6
  %s9 = scalar_select 0, %s8, %s6
  $region1: #{head_projection.1} parent=0
    #allocation2 [shape = 'u8[1048576]{0}', space=vmem, size = 0x100000, scoped, tag = 'input window, operand 1, single buffered']
    #allocation3 [shape = 's32[1]{0}', space=sflag, size = 0x4, scoped, tag = 'scoped memory for head_projection.1']
    #allocation4 [shape = 's32[1]{0}', space=sflag, size = 0x4, scoped, tag = 'scoped memory for head_projection.1']
    #allocation5 [shape = 'u8[262144]{0}', space=vmem, size = 0x40000, scoped, tag = 'input window, operand 3, single buffered']
    #allocation6 [shape = 's32[1]{0}', space=sflag, size = 0x4, scoped, tag = 'scoped memory for head_projection.1']
    #allocation7 [shape = 'u8[8192]{0}', space=vmem, size = 0x2000, scoped, tag = 'output window, operand 0, single buffered']
    %10 = vsyncpa [#allocation3], 0
    %11 = vsyncpa [#allocation6], 0
    %12 = vsyncpa [#allocation4], 0
    // Predicated region
    $region2: #{head_projection.1} parent=1 // pred_check
      _
    $region3: #{head_projection.1} parent=1 // pred_check_branch
      %14 = sbr.rel (0) target = $region5
    $region4: #{head_projection.1} parent=1 // pred_region
      _
    $region5: #{head_projection.1} parent=1 // pred_fallthru
      _
    // Predicated region
    $region6: #{head_projection.1} parent=1 // pred_check
      _
    $region7: #{head_projection.1} parent=1 // pred_check_branch
      %16 = sbr.rel (0) target = $region9
    $region8: #{head_projection.1} parent=1 // pred_region
      %s18 = ssub.s32 32768, 32768
      %19 = vsyncadd [#allocation3], %s18
      %s20 = sshll.u32 [#allocation2], 4
      %s21 = int_to_ptr.vmem [resolvable:$true] %s20
      %26 = dma.hbm_to_vmem [thread:$0]  %s1, 32768, %s21, [#allocation3], 256, 256, 16
    $region9: #{head_projection.1} parent=1 // pred_fallthru
      _
    // Predicated region
    $region10: #{head_projection.1} parent=1 // pred_check
      _
    $region11: #{head_projection.1} parent=1 // pred_check_branch
      %28 = sbr.rel (0) target = $region13
    $region12: #{head_projection.1} parent=1 // pred_region
      _
    $region13: #{head_projection.1} parent=1 // pred_fallthru
      _
    // Predicated region
    $region14: #{head_projection.1} parent=1 // pred_check
      _
    $region15: #{head_projection.1} parent=1 // pred_check_branch
      %30 = sbr.rel (0) target = $region17
    $region16: #{head_projection.1} parent=1 // pred_region
      %s32 = ssub.s32 8192, 8192
      %33 = vsyncadd [#allocation6], %s32
      %s34 = sshll.u32 [#allocation5], 4
      %s35 = int_to_ptr.vmem [resolvable:$true] %s34
      %40 = dma.hbm_to_vmem [thread:$0]  %s3, 8192, %s35, [#allocation6], 128, 128, 8
    $region17: #{head_projection.1} parent=1 // pred_fallthru
      _
    // Predicated region
    $region18: #{head_projection.1} parent=1 // pred_check
      _
    $region19: #{head_projection.1} parent=1 // pred_check_branch
      %42 = sbr.rel (0) target = $region21
    $region20: #{head_projection.1} parent=1 // pred_region
      _
    $region21: #{head_projection.1} parent=1 // pred_fallthru
      _
    // Predicated region
    $region22: #{head_projection.1} parent=1 // pred_check
      _
    $region23: #{head_projection.1} parent=1 // pred_check_branch
      %44 = sbr.rel (0) target = $region25
    $region24: #{head_projection.1} parent=1 // pred_region
      %45 = dma.done [#allocation3], 32768
    $region25: #{head_projection.1} parent=1 // pred_fallthru
      _
    // Predicated region
    $region26: #{head_projection.1} parent=1 // pred_check
      _
    $region27: #{head_projection.1} parent=1 // pred_check_branch
      %47 = sbr.rel (0) target = $region29
    $region28: #{head_projection.1} parent=1 // pred_region
      %48 = dma.done [#allocation6], 8192
    $region29: #{head_projection.1} parent=1 // pred_fallthru
      _
    %v49 = vld [vmem:[%s0] sm:$0xff]
    %v50 = vld [vmem:[%s0 + $0x8] sm:$0xff]
    %v51 = vld [vmem:[%s0 + $0x10] sm:$0xff]
    %v52 = vld [vmem:[%s0 + $0x18] sm:$0xff]
    %v53 = vld [vmem:[#allocation2] sm:$0xff]
    %v54 = vld [vmem:[#allocation2 + $0x8] sm:$0xff]
    %v55 = vld [vmem:[#allocation2 + $0x10] sm:$0xff]
    %v56 = vld [vmem:[#allocation2 + $0x18] sm:$0xff]
    %v57 = vld [vmem:[#allocation2 + $0x20] sm:$0xff]
    %v58 = vld [vmem:[#allocation2 + $0x28] sm:$0xff]
    %v59 = vld [vmem:[#allocation2 + $0x30] sm:$0xff]
    %v60 = vld [vmem:[#allocation2 + $0x38] sm:$0xff]
    %v61 = vld [vmem:[#allocation2 + $0x40] sm:$0xff]
    %v62 = vld [vmem:[#allocation2 + $0x48] sm:$0xff]
    %v63 = vld [vmem:[#allocation2 + $0x50] sm:$0xff]
    %v64 = vld [vmem:[#allocation2 + $0x58] sm:$0xff]
    %v65 = vld [vmem:[#allocation2 + $0x60] sm:$0xff]
    %v66 = vld [vmem:[#allocation2 + $0x68] sm:$0xff]
    %v67 = vld [vmem:[#allocation2 + $0x70] sm:$0xff]
    %v68 = vld [vmem:[#allocation2 + $0x78] sm:$0xff]
    %v69 = vld [vmem:[#allocation2 + $0x80] sm:$0xff]
    %v70 = vld [vmem:[#allocation2 + $0x88] sm:$0xff]
    %v71 = vld [vmem:[#allocation2 + $0x90] sm:$0xff]
    %v72 = vld [vmem:[#allocation2 + $0x98] sm:$0xff]
    %v73 = vld [vmem:[#allocation2 + $0xa0] sm:$0xff]
    %v74 = vld [vmem:[#allocation2 + $0xa8] sm:$0xff]
    %v75 = vld [vmem:[#allocation2 + $0xb0] sm:$0xff]
    %v76 = vld [vmem:[#allocation2 + $0xb8] sm:$0xff]
    %v77 = vld [vmem:[#allocation2 + $0xc0] sm:$0xff]
    %v78 = vld [vmem:[#allocation2 + $0xc8] sm:$0xff]
    %v79 = vld [vmem:[#allocation2 + $0xd0] sm:$0xff]
    %v80 = vld [vmem:[#allocation2 + $0xd8] sm:$0xff]
    %v81 = vld [vmem:[#allocation2 + $0xe0] sm:$0xff]
    %v82 = vld [vmem:[#allocation2 + $0xe8] sm:$0xff]
    %v83 = vld [vmem:[#allocation2 + $0xf0] sm:$0xff]
    %v84 = vld [vmem:[#allocation2 + $0xf8] sm:$0xff]
    %v85 = vld [vmem:[#allocation2 + $0x100] sm:$0xff]
    %v86 = vld [vmem:[#allocation2 + $0x108] sm:$0xff]
    %v87 = vld [vmem:[#allocation2 + $0x110] sm:$0xff]
    %v88 = vld [vmem:[#allocation2 + $0x118] sm:$0xff]
    %v89 = vld [vmem:[#allocation2 + $0x120] sm:$0xff]
    %v90 = vld [vmem:[#allocation2 + $0x128] sm:$0xff]
    %v91 = vld [vmem:[#allocation2 + $0x130] sm:$0xff]
    %v92 = vld [vmem:[#allocation2 + $0x138] sm:$0xff]
    %v93 = vld [vmem:[#allocation2 + $0x140] sm:$0xff]
    %v94 = vld [vmem:[#allocation2 + $0x148] sm:$0xff]
    %v95 = vld [vmem:[#allocation2 + $0x150] sm:$0xff]
    %v96 = vld [vmem:[#allocation2 + $0x158] sm:$0xff]
    %v97 = vld [vmem:[#allocation2 + $0x160] sm:$0xff]
    %v98 = vld [vmem:[#allocation2 + $0x168] sm:$0xff]
    %v99 = vld [vmem:[#allocation2 + $0x170] sm:$0xff]
    %v100 = vld [vmem:[#allocation2 + $0x178] sm:$0xff]
    %v101 = vld [vmem:[#allocation2 + $0x180] sm:$0xff]
    %v102 = vld [vmem:[#allocation2 + $0x188] sm:$0xff]
    %v103 = vld [vmem:[#allocation2 + $0x190] sm:$0xff]
    %v104 = vld [vmem:[#allocation2 + $0x198] sm:$0xff]
    %v105 = vld [vmem:[#allocation2 + $0x1a0] sm:$0xff]
    %v106 = vld [vmem:[#allocation2 + $0x1a8] sm:$0xff]
    %v107 = vld [vmem:[#allocation2 + $0x1b0] sm:$0xff]
    %v108 = vld [vmem:[#allocation2 + $0x1b8] sm:$0xff]
    %v109 = vld [vmem:[#allocation2 + $0x1c0] sm:$0xff]
    %v110 = vld [vmem:[#allocation2 + $0x1c8] sm:$0xff]
    %v111 = vld [vmem:[#allocation2 + $0x1d0] sm:$0xff]
    %v112 = vld [vmem:[#allocation2 + $0x1d8] sm:$0xff]
    %v113 = vld [vmem:[#allocation2 + $0x1e0] sm:$0xff]
    %v114 = vld [vmem:[#allocation2 + $0x1e8] sm:$0xff]
    %v115 = vld [vmem:[#allocation2 + $0x1f0] sm:$0xff]
    %v116 = vld [vmem:[#allocation2 + $0x1f8] sm:$0xff]
    %v117 = vld [vmem:[#allocation2 + $0x200] sm:$0xff]
    %v118 = vld [vmem:[#allocation2 + $0x208] sm:$0xff]
    %v119 = vld [vmem:[#allocation2 + $0x210] sm:$0xff]
    %v120 = vld [vmem:[#allocation2 + $0x218] sm:$0xff]
    %v121 = vld [vmem:[#allocation2 + $0x220] sm:$0xff]
    %v122 = vld [vmem:[#allocation2 + $0x228] sm:$0xff]
    %v123 = vld [vmem:[#allocation2 + $0x230] sm:$0xff]
    %v124 = vld [vmem:[#allocation2 + $0x238] sm:$0xff]
    %v125 = vld [vmem:[#allocation2 + $0x240] sm:$0xff]
    %v126 = vld [vmem:[#allocation2 + $0x248] sm:$0xff]
    %v127 = vld [vmem:[#allocation2 + $0x250] sm:$0xff]
    %v128 = vld [vmem:[#allocation2 + $0x258] sm:$0xff]
    %v129 = vld [vmem:[#allocation2 + $0x260] sm:$0xff]
    %v130 = vld [vmem:[#allocation2 + $0x268] sm:$0xff]
    %v131 = vld [vmem:[#allocation2 + $0x270] sm:$0xff]
    %v132 = vld [vmem:[#allocation2 + $0x278] sm:$0xff]
    %v133 = vld [vmem:[#allocation2 + $0x280] sm:$0xff]
    %v134 = vld [vmem:[#allocation2 + $0x288] sm:$0xff]
    %v135 = vld [vmem:[#allocation2 + $0x290] sm:$0xff]
    %v136 = vld [vmem:[#allocation2 + $0x298] sm:$0xff]
    %v137 = vld [vmem:[#allocation2 + $0x2a0] sm:$0xff]
    %v138 = vld [vmem:[#allocation2 + $0x2a8] sm:$0xff]
    %v139 = vld [vmem:[#allocation2 + $0x2b0] sm:$0xff]
    %v140 = vld [vmem:[#allocation2 + $0x2b8] sm:$0xff]
    %v141 = vld [vmem:[#allocation2 + $0x2c0] sm:$0xff]
    %v142 = vld [vmem:[#allocation2 + $0x2c8] sm:$0xff]
    %v143 = vld [vmem:[#allocation2 + $0x2d0] sm:$0xff]
    %v144 = vld [vmem:[#allocation2 + $0x2d8] sm:$0xff]
    %v145 = vld [vmem:[#allocation2 + $0x2e0] sm:$0xff]
    %v146 = vld [vmem:[#allocation2 + $0x2e8] sm:$0xff]
    %v147 = vld [vmem:[#allocation2 + $0x2f0] sm:$0xff]
    %v148 = vld [vmem:[#allocation2 + $0x2f8] sm:$0xff]
    %v149 = vld [vmem:[#allocation2 + $0x300] sm:$0xff]
    %v150 = vld [vmem:[#allocation2 + $0x308] sm:$0xff]
    %v151 = vld [vmem:[#allocation2 + $0x310] sm:$0xff]
    %v152 = vld [vmem:[#allocation2 + $0x318] sm:$0xff]
    %v153 = vld [vmem:[#allocation2 + $0x320] sm:$0xff]
    %v154 = vld [vmem:[#allocation2 + $0x328] sm:$0xff]
    %v155 = vld [vmem:[#allocation2 + $0x330] sm:$0xff]
    %v156 = vld [vmem:[#allocation2 + $0x338] sm:$0xff]
    %v157 = vld [vmem:[#allocation2 + $0x340] sm:$0xff]
    %v158 = vld [vmem:[#allocation2 + $0x348] sm:$0xff]
    %v159 = vld [vmem:[#allocation2 + $0x350] sm:$0xff]
    %v160 = vld [vmem:[#allocation2 + $0x358] sm:$0xff]
    %v161 = vld [vmem:[#allocation2 + $0x360] sm:$0xff]
    %v162 = vld [vmem:[#allocation2 + $0x368] sm:$0xff]
    %v163 = vld [vmem:[#allocation2 + $0x370] sm:$0xff]
    %v164 = vld [vmem:[#allocation2 + $0x378] sm:$0xff]
    %v165 = vld [vmem:[#allocation2 + $0x380] sm:$0xff]
    %v166 = vld [vmem:[#allocation2 + $0x388] sm:$0xff]
    %v167 = vld [vmem:[#allocation2 + $0x390] sm:$0xff]
    %v168 = vld [vmem:[#allocation2 + $0x398] sm:$0xff]
    %v169 = vld [vmem:[#allocation2 + $0x3a0] sm:$0xff]
    %v170 = vld [vmem:[#allocation2 + $0x3a8] sm:$0xff]
    %v171 = vld [vmem:[#allocation2 + $0x3b0] sm:$0xff]
    %v172 = vld [vmem:[#allocation2 + $0x3b8] sm:$0xff]
    %v173 = vld [vmem:[#allocation2 + $0x3c0] sm:$0xff]
    %v174 = vld [vmem:[#allocation2 + $0x3c8] sm:$0xff]
    %v175 = vld [vmem:[#allocation2 + $0x3d0] sm:$0xff]
    %v176 = vld [vmem:[#allocation2 + $0x3d8] sm:$0xff]
    %v177 = vld [vmem:[#allocation2 + $0x3e0] sm:$0xff]
    %v178 = vld [vmem:[#allocation2 + $0x3e8] sm:$0xff]
    %v179 = vld [vmem:[#allocation2 + $0x3f0] sm:$0xff]
    %v180 = vld [vmem:[#allocation2 + $0x3f8] sm:$0xff]
    %v181 = vld [vmem:[#allocation2 + $0x400] sm:$0xff]
    %v182 = vld [vmem:[#allocation2 + $0x408] sm:$0xff]
    %v183 = vld [vmem:[#allocation2 + $0x410] sm:$0xff]
    %v184 = vld [vmem:[#allocation2 + $0x418] sm:$0xff]
    %v185 = vld [vmem:[#allocation2 + $0x420] sm:$0xff]
    %v186 = vld [vmem:[#allocation2 + $0x428] sm:$0xff]
    %v187 = vld [vmem:[#allocation2 + $0x430] sm:$0xff]
    %v188 = vld [vmem:[#allocation2 + $0x438] sm:$0xff]
    %v189 = vld [vmem:[#allocation2 + $0x440] sm:$0xff]
    %v190 = vld [vmem:[#allocation2 + $0x448] sm:$0xff]
    %v191 = vld [vmem:[#allocation2 + $0x450] sm:$0xff]
    %v192 = vld [vmem:[#allocation2 + $0x458] sm:$0xff]
    %v193 = vld [vmem:[#allocation2 + $0x460] sm:$0xff]
    %v194 = vld [vmem:[#allocation2 + $0x468] sm:$0xff]
    %v195 = vld [vmem:[#allocation2 + $0x470] sm:$0xff]
    %v196 = vld [vmem:[#allocation2 + $0x478] sm:$0xff]
    %v197 = vld [vmem:[#allocation2 + $0x480] sm:$0xff]
    %v198 = vld [vmem:[#allocation2 + $0x488] sm:$0xff]
    %v199 = vld [vmem:[#allocation2 + $0x490] sm:$0xff]
    %v200 = vld [vmem:[#allocation2 + $0x498] sm:$0xff]
    %v201 = vld [vmem:[#allocation2 + $0x4a0] sm:$0xff]
    %v202 = vld [vmem:[#allocation2 + $0x4a8] sm:$0xff]
    %v203 = vld [vmem:[#allocation2 + $0x4b0] sm:$0xff]
    %v204 = vld [vmem:[#allocation2 + $0x4b8] sm:$0xff]
    %v205 = vld [vmem:[#allocation2 + $0x4c0] sm:$0xff]
    %v206 = vld [vmem:[#allocation2 + $0x4c8] sm:$0xff]
    %v207 = vld [vmem:[#allocation2 + $0x4d0] sm:$0xff]
    %v208 = vld [vmem:[#allocation2 + $0x4d8] sm:$0xff]
    %v209 = vld [vmem:[#allocation2 + $0x4e0] sm:$0xff]
    %v210 = vld [vmem:[#allocation2 + $0x4e8] sm:$0xff]
    %v211 = vld [vmem:[#allocation2 + $0x4f0] sm:$0xff]
    %v212 = vld [vmem:[#allocation2 + $0x4f8] sm:$0xff]
    %v213 = vld [vmem:[#allocation2 + $0x500] sm:$0xff]
    %v214 = vld [vmem:[#allocation2 + $0x508] sm:$0xff]
    %v215 = vld [vmem:[#allocation2 + $0x510] sm:$0xff]
    %v216 = vld [vmem:[#allocation2 + $0x518] sm:$0xff]
    %v217 = vld [vmem:[#allocation2 + $0x520] sm:$0xff]
    %v218 = vld [vmem:[#allocation2 + $0x528] sm:$0xff]
    %v219 = vld [vmem:[#allocation2 + $0x530] sm:$0xff]
    %v220 = vld [vmem:[#allocation2 + $0x538] sm:$0xff]
    %v221 = vld [vmem:[#allocation2 + $0x540] sm:$0xff]
    %v222 = vld [vmem:[#allocation2 + $0x548] sm:$0xff]
    %v223 = vld [vmem:[#allocation2 + $0x550] sm:$0xff]
    %v224 = vld [vmem:[#allocation2 + $0x558] sm:$0xff]
    %v225 = vld [vmem:[#allocation2 + $0x560] sm:$0xff]
    %v226 = vld [vmem:[#allocation2 + $0x568] sm:$0xff]
    %v227 = vld [vmem:[#allocation2 + $0x570] sm:$0xff]
    %v228 = vld [vmem:[#allocation2 + $0x578] sm:$0xff]
    %v229 = vld [vmem:[#allocation2 + $0x580] sm:$0xff]
    %v230 = vld [vmem:[#allocation2 + $0x588] sm:$0xff]
    %v231 = vld [vmem:[#allocation2 + $0x590] sm:$0xff]
    %v232 = vld [vmem:[#allocation2 + $0x598] sm:$0xff]
    %v233 = vld [vmem:[#allocation2 + $0x5a0] sm:$0xff]
    %v234 = vld [vmem:[#allocation2 + $0x5a8] sm:$0xff]
    %v235 = vld [vmem:[#allocation2 + $0x5b0] sm:$0xff]
    %v236 = vld [vmem:[#allocation2 + $0x5b8] sm:$0xff]
    %v237 = vld [vmem:[#allocation2 + $0x5c0] sm:$0xff]
    %v238 = vld [vmem:[#allocation2 + $0x5c8] sm:$0xff]
    %v239 = vld [vmem:[#allocation2 + $0x5d0] sm:$0xff]
    %v240 = vld [vmem:[#allocation2 + $0x5d8] sm:$0xff]
    %v241 = vld [vmem:[#allocation2 + $0x5e0] sm:$0xff]
    %v242 = vld [vmem:[#allocation2 + $0x5e8] sm:$0xff]
    %v243 = vld [vmem:[#allocation2 + $0x5f0] sm:$0xff]
    %v244 = vld [vmem:[#allocation2 + $0x5f8] sm:$0xff]
    %v245 = vld [vmem:[#allocation2 + $0x600] sm:$0xff]
    %v246 = vld [vmem:[#allocation2 + $0x608] sm:$0xff]
    %v247 = vld [vmem:[#allocation2 + $0x610] sm:$0xff]
    %v248 = vld [vmem:[#allocation2 + $0x618] sm:$0xff]
    %v249 = vld [vmem:[#allocation2 + $0x620] sm:$0xff]
    %v250 = vld [vmem:[#allocation2 + $0x628] sm:$0xff]
    %v251 = vld [vmem:[#allocation2 + $0x630] sm:$0xff]
    %v252 = vld [vmem:[#allocation2 + $0x638] sm:$0xff]
    %v253 = vld [vmem:[#allocation2 + $0x640] sm:$0xff]
    %v254 = vld [vmem:[#allocation2 + $0x648] sm:$0xff]
    %v255 = vld [vmem:[#allocation2 + $0x650] sm:$0xff]
    %v256 = vld [vmem:[#allocation2 + $0x658] sm:$0xff]
    %v257 = vld [vmem:[#allocation2 + $0x660] sm:$0xff]
    %v258 = vld [vmem:[#allocation2 + $0x668] sm:$0xff]
    %v259 = vld [vmem:[#allocation2 + $0x670] sm:$0xff]
    %v260 = vld [vmem:[#allocation2 + $0x678] sm:$0xff]
    %v261 = vld [vmem:[#allocation2 + $0x680] sm:$0xff]
    %v262 = vld [vmem:[#allocation2 + $0x688] sm:$0xff]
    %v263 = vld [vmem:[#allocation2 + $0x690] sm:$0xff]
    %v264 = vld [vmem:[#allocation2 + $0x698] sm:$0xff]
    %v265 = vld [vmem:[#allocation2 + $0x6a0] sm:$0xff]
    %v266 = vld [vmem:[#allocation2 + $0x6a8] sm:$0xff]
    %v267 = vld [vmem:[#allocation2 + $0x6b0] sm:$0xff]
    %v268 = vld [vmem:[#allocation2 + $0x6b8] sm:$0xff]
    %v269 = vld [vmem:[#allocation2 + $0x6c0] sm:$0xff]
    %v270 = vld [vmem:[#allocation2 + $0x6c8] sm:$0xff]
    %v271 = vld [vmem:[#allocation2 + $0x6d0] sm:$0xff]
    %v272 = vld [vmem:[#allocation2 + $0x6d8] sm:$0xff]
    %v273 = vld [vmem:[#allocation2 + $0x6e0] sm:$0xff]
    %v274 = vld [vmem:[#allocation2 + $0x6e8] sm:$0xff]
    %v275 = vld [vmem:[#allocation2 + $0x6f0] sm:$0xff]
    %v276 = vld [vmem:[#allocation2 + $0x6f8] sm:$0xff]
    %v277 = vld [vmem:[#allocation2 + $0x700] sm:$0xff]
    %v278 = vld [vmem:[#allocation2 + $0x708] sm:$0xff]
    %v279 = vld [vmem:[#allocation2 + $0x710] sm:$0xff]
    %v280 = vld [vmem:[#allocation2 + $0x718] sm:$0xff]
    %v281 = vld [vmem:[#allocation2 + $0x720] sm:$0xff]
    %v282 = vld [vmem:[#allocation2 + $0x728] sm:$0xff]
    %v283 = vld [vmem:[#allocation2 + $0x730] sm:$0xff]
    %v284 = vld [vmem:[#allocation2 + $0x738] sm:$0xff]
    %v285 = vld [vmem:[#allocation2 + $0x740] sm:$0xff]
    %v286 = vld [vmem:[#allocation2 + $0x748] sm:$0xff]
    %v287 = vld [vmem:[#allocation2 + $0x750] sm:$0xff]
    %v288 = vld [vmem:[#allocation2 + $0x758] sm:$0xff]
    %v289 = vld [vmem:[#allocation2 + $0x760] sm:$0xff]
    %v290 = vld [vmem:[#allocation2 + $0x768] sm:$0xff]
    %v291 = vld [vmem:[#allocation2 + $0x770] sm:$0xff]
    %v292 = vld [vmem:[#allocation2 + $0x778] sm:$0xff]
    %v293 = vld [vmem:[#allocation2 + $0x780] sm:$0xff]
    %v294 = vld [vmem:[#allocation2 + $0x788] sm:$0xff]
    %v295 = vld [vmem:[#allocation2 + $0x790] sm:$0xff]
    %v296 = vld [vmem:[#allocation2 + $0x798] sm:$0xff]
    %v297 = vld [vmem:[#allocation2 + $0x7a0] sm:$0xff]
    %v298 = vld [vmem:[#allocation2 + $0x7a8] sm:$0xff]
    %v299 = vld [vmem:[#allocation2 + $0x7b0] sm:$0xff]
    %v300 = vld [vmem:[#allocation2 + $0x7b8] sm:$0xff]
    %v301 = vld [vmem:[#allocation2 + $0x7c0] sm:$0xff]
    %v302 = vld [vmem:[#allocation2 + $0x7c8] sm:$0xff]
    %v303 = vld [vmem:[#allocation2 + $0x7d0] sm:$0xff]
    %v304 = vld [vmem:[#allocation2 + $0x7d8] sm:$0xff]
    %v305 = vld [vmem:[#allocation2 + $0x7e0] sm:$0xff]
    %v306 = vld [vmem:[#allocation2 + $0x7e8] sm:$0xff]
    %v307 = vld [vmem:[#allocation2 + $0x7f0] sm:$0xff]
    %v308 = vld [vmem:[#allocation2 + $0x7f8] sm:$0xff]
    %v309 = vld [vmem:[%s2] sm:$0xf]
    %v311 = vlaneseq
    %v312 = vshrl.u32 %v311, 7
    %v313 = vsub.s32 0, %v312
    %v314 = vrot.slane %v309, %v313
    %v315 = vlaneseq
    %v316 = vshrl.u32 %v315, 7
    %v317 = vsub.s32 1, %v316
    %v318 = vrot.slane %v309, %v317
    %v319 = vlaneseq
    %v320 = vshrl.u32 %v319, 7
    %v321 = vsub.s32 2, %v320
    %v322 = vrot.slane %v309, %v321
    %v323 = vlaneseq
    %v324 = vshrl.u32 %v323, 7
    %v325 = vsub.s32 3, %v324
    %v326 = vrot.slane %v309, %v325
    %v335 = vunpack.c.l.b16 %v49
    %v336 = vunpack.c.h.b16 %v49
    %v337 = vunpack.c.l.b16 %v50
    %v338 = vunpack.c.h.b16 %v50
    %v339 = vunpack.c.l.b16 %v51
    %v340 = vunpack.c.h.b16 %v51
    %v341 = vunpack.c.l.b16 %v52
    %v342 = vunpack.c.h.b16 %v52
    %v343 = vpack.c.b16 %v335, %v335
    %v344 = vpack.c.b16 %v336, %v336
    %v345 = vpack.c.b16 %v337, %v337
    %v346 = vpack.c.b16 %v338, %v338
    %v347 = vpack.c.b16 %v339, %v339
    %v348 = vpack.c.b16 %v340, %v340
    %v349 = vpack.c.b16 %v341, %v341
    %v350 = vpack.c.b16 %v342, %v342
    %v615 = vunpack.c.l.b16 %v53
    %v616 = vunpack.c.h.b16 %v53
    %v617 = vunpack.c.l.b16 %v54
    %v618 = vunpack.c.h.b16 %v54
    %v619 = vunpack.c.l.b16 %v55
    %v620 = vunpack.c.h.b16 %v55
    %v621 = vunpack.c.l.b16 %v56
    %v622 = vunpack.c.h.b16 %v56
    %v623 = vunpack.c.l.b16 %v57
    %v624 = vunpack.c.h.b16 %v57
    %v625 = vunpack.c.l.b16 %v58
    %v626 = vunpack.c.h.b16 %v58
    %v627 = vunpack.c.l.b16 %v59
    %v628 = vunpack.c.h.b16 %v59
    %v629 = vunpack.c.l.b16 %v60
    %v630 = vunpack.c.h.b16 %v60
    %v631 = vunpack.c.l.b16 %v61
    %v632 = vunpack.c.h.b16 %v61
    %v633 = vunpack.c.l.b16 %v62
    %v634 = vunpack.c.h.b16 %v62
    %v635 = vunpack.c.l.b16 %v63
    %v636 = vunpack.c.h.b16 %v63
    %v637 = vunpack.c.l.b16 %v64
    %v638 = vunpack.c.h.b16 %v64
    %v639 = vunpack.c.l.b16 %v65
    %v640 = vunpack.c.h.b16 %v65
    %v641 = vunpack.c.l.b16 %v66
    %v642 = vunpack.c.h.b16 %v66
    %v643 = vunpack.c.l.b16 %v67
    %v644 = vunpack.c.h.b16 %v67
    %v645 = vunpack.c.l.b16 %v68
    %v646 = vunpack.c.h.b16 %v68
    %v647 = vunpack.c.l.b16 %v69
    %v648 = vunpack.c.h.b16 %v69
    %v649 = vunpack.c.l.b16 %v70
    %v650 = vunpack.c.h.b16 %v70
    %v651 = vunpack.c.l.b16 %v71
    %v652 = vunpack.c.h.b16 %v71
    %v653 = vunpack.c.l.b16 %v72
    %v654 = vunpack.c.h.b16 %v72
    %v655 = vunpack.c.l.b16 %v73
    %v656 = vunpack.c.h.b16 %v73
    %v657 = vunpack.c.l.b16 %v74
    %v658 = vunpack.c.h.b16 %v74
    %v659 = vunpack.c.l.b16 %v75
    %v660 = vunpack.c.h.b16 %v75
    %v661 = vunpack.c.l.b16 %v76
    %v662 = vunpack.c.h.b16 %v76
    %v663 = vunpack.c.l.b16 %v77
    %v664 = vunpack.c.h.b16 %v77
    %v665 = vunpack.c.l.b16 %v78
    %v666 = vunpack.c.h.b16 %v78
    %v667 = vunpack.c.l.b16 %v79
    %v668 = vunpack.c.h.b16 %v79
    %v669 = vunpack.c.l.b16 %v80
    %v670 = vunpack.c.h.b16 %v80
    %v671 = vunpack.c.l.b16 %v81
    %v672 = vunpack.c.h.b16 %v81
    %v673 = vunpack.c.l.b16 %v82
    %v674 = vunpack.c.h.b16 %v82
    %v675 = vunpack.c.l.b16 %v83
    %v676 = vunpack.c.h.b16 %v83
    %v677 = vunpack.c.l.b16 %v84
    %v678 = vunpack.c.h.b16 %v84
    %v679 = vunpack.c.l.b16 %v85
    %v680 = vunpack.c.h.b16 %v85
    %v681 = vunpack.c.l.b16 %v86
    %v682 = vunpack.c.h.b16 %v86
    %v683 = vunpack.c.l.b16 %v87
    %v684 = vunpack.c.h.b16 %v87
    %v685 = vunpack.c.l.b16 %v88
    %v686 = vunpack.c.h.b16 %v88
    %v687 = vunpack.c.l.b16 %v89
    %v688 = vunpack.c.h.b16 %v89
    %v689 = vunpack.c.l.b16 %v90
    %v690 = vunpack.c.h.b16 %v90
    %v691 = vunpack.c.l.b16 %v91
    %v692 = vunpack.c.h.b16 %v91
    %v693 = vunpack.c.l.b16 %v92
    %v694 = vunpack.c.h.b16 %v92
    %v695 = vunpack.c.l.b16 %v93
    %v696 = vunpack.c.h.b16 %v93
    %v697 = vunpack.c.l.b16 %v94
    %v698 = vunpack.c.h.b16 %v94
    %v699 = vunpack.c.l.b16 %v95
    %v700 = vunpack.c.h.b16 %v95
    %v701 = vunpack.c.l.b16 %v96
    %v702 = vunpack.c.h.b16 %v96
    %v703 = vunpack.c.l.b16 %v97
    %v704 = vunpack.c.h.b16 %v97
    %v705 = vunpack.c.l.b16 %v98
    %v706 = vunpack.c.h.b16 %v98
    %v707 = vunpack.c.l.b16 %v99
    %v708 = vunpack.c.h.b16 %v99
    %v709 = vunpack.c.l.b16 %v100
    %v710 = vunpack.c.h.b16 %v100
    %v711 = vunpack.c.l.b16 %v101
    %v712 = vunpack.c.h.b16 %v101
    %v713 = vunpack.c.l.b16 %v102
    %v714 = vunpack.c.h.b16 %v102
    %v715 = vunpack.c.l.b16 %v103
    %v716 = vunpack.c.h.b16 %v103
    %v717 = vunpack.c.l.b16 %v104
    %v718 = vunpack.c.h.b16 %v104
    %v719 = vunpack.c.l.b16 %v105
    %v720 = vunpack.c.h.b16 %v105
    %v721 = vunpack.c.l.b16 %v106
    %v722 = vunpack.c.h.b16 %v106
    %v723 = vunpack.c.l.b16 %v107
    %v724 = vunpack.c.h.b16 %v107
    %v725 = vunpack.c.l.b16 %v108
    %v726 = vunpack.c.h.b16 %v108
    %v727 = vunpack.c.l.b16 %v109
    %v728 = vunpack.c.h.b16 %v109
    %v729 = vunpack.c.l.b16 %v110
    %v730 = vunpack.c.h.b16 %v110
    %v731 = vunpack.c.l.b16 %v111
    %v732 = vunpack.c.h.b16 %v111
    %v733 = vunpack.c.l.b16 %v112
    %v734 = vunpack.c.h.b16 %v112
    %v735 = vunpack.c.l.b16 %v113
    %v736 = vunpack.c.h.b16 %v113
    %v737 = vunpack.c.l.b16 %v114
    %v738 = vunpack.c.h.b16 %v114
    %v739 = vunpack.c.l.b16 %v115
    %v740 = vunpack.c.h.b16 %v115
    %v741 = vunpack.c.l.b16 %v116
    %v742 = vunpack.c.h.b16 %v116
    %v743 = vunpack.c.l.b16 %v117
    %v744 = vunpack.c.h.b16 %v117
    %v745 = vunpack.c.l.b16 %v118
    %v746 = vunpack.c.h.b16 %v118
    %v747 = vunpack.c.l.b16 %v119
    %v748 = vunpack.c.h.b16 %v119
    %v749 = vunpack.c.l.b16 %v120
    %v750 = vunpack.c.h.b16 %v120
    %v751 = vunpack.c.l.b16 %v121
    %v752 = vunpack.c.h.b16 %v121
    %v753 = vunpack.c.l.b16 %v122
    %v754 = vunpack.c.h.b16 %v122
    %v755 = vunpack.c.l.b16 %v123
    %v756 = vunpack.c.h.b16 %v123
    %v757 = vunpack.c.l.b16 %v124
    %v758 = vunpack.c.h.b16 %v124
    %v759 = vunpack.c.l.b16 %v125
    %v760 = vunpack.c.h.b16 %v125
    %v761 = vunpack.c.l.b16 %v126
    %v762 = vunpack.c.h.b16 %v126
    %v763 = vunpack.c.l.b16 %v127
    %v764 = vunpack.c.h.b16 %v127
    %v765 = vunpack.c.l.b16 %v128
    %v766 = vunpack.c.h.b16 %v128
    %v767 = vunpack.c.l.b16 %v129
    %v768 = vunpack.c.h.b16 %v129
    %v769 = vunpack.c.l.b16 %v130
    %v770 = vunpack.c.h.b16 %v130
    %v771 = vunpack.c.l.b16 %v131
    %v772 = vunpack.c.h.b16 %v131
    %v773 = vunpack.c.l.b16 %v132
    %v774 = vunpack.c.h.b16 %v132
    %v775 = vunpack.c.l.b16 %v133
    %v776 = vunpack.c.h.b16 %v133
    %v777 = vunpack.c.l.b16 %v134
    %v778 = vunpack.c.h.b16 %v134
    %v779 = vunpack.c.l.b16 %v135
    %v780 = vunpack.c.h.b16 %v135
    %v781 = vunpack.c.l.b16 %v136
    %v782 = vunpack.c.h.b16 %v136
    %v783 = vunpack.c.l.b16 %v137
    %v784 = vunpack.c.h.b16 %v137
    %v785 = vunpack.c.l.b16 %v138
    %v786 = vunpack.c.h.b16 %v138
    %v787 = vunpack.c.l.b16 %v139
    %v788 = vunpack.c.h.b16 %v139
    %v789 = vunpack.c.l.b16 %v140
    %v790 = vunpack.c.h.b16 %v140
    %v791 = vunpack.c.l.b16 %v141
    %v792 = vunpack.c.h.b16 %v141
    %v793 = vunpack.c.l.b16 %v142
    %v794 = vunpack.c.h.b16 %v142
    %v795 = vunpack.c.l.b16 %v143
    %v796 = vunpack.c.h.b16 %v143
    %v797 = vunpack.c.l.b16 %v144
    %v798 = vunpack.c.h.b16 %v144
    %v799 = vunpack.c.l.b16 %v145
    %v800 = vunpack.c.h.b16 %v145
    %v801 = vunpack.c.l.b16 %v146
    %v802 = vunpack.c.h.b16 %v146
    %v803 = vunpack.c.l.b16 %v147
    %v804 = vunpack.c.h.b16 %v147
    %v805 = vunpack.c.l.b16 %v148
    %v806 = vunpack.c.h.b16 %v148
    %v807 = vunpack.c.l.b16 %v149
    %v808 = vunpack.c.h.b16 %v149
    %v809 = vunpack.c.l.b16 %v150
    %v810 = vunpack.c.h.b16 %v150
    %v811 = vunpack.c.l.b16 %v151
    %v812 = vunpack.c.h.b16 %v151
    %v813 = vunpack.c.l.b16 %v152
    %v814 = vunpack.c.h.b16 %v152
    %v815 = vunpack.c.l.b16 %v153
    %v816 = vunpack.c.h.b16 %v153
    %v817 = vunpack.c.l.b16 %v154
    %v818 = vunpack.c.h.b16 %v154
    %v819 = vunpack.c.l.b16 %v155
    %v820 = vunpack.c.h.b16 %v155
    %v821 = vunpack.c.l.b16 %v156
    %v822 = vunpack.c.h.b16 %v156
    %v823 = vunpack.c.l.b16 %v157
    %v824 = vunpack.c.h.b16 %v157
    %v825 = vunpack.c.l.b16 %v158
    %v826 = vunpack.c.h.b16 %v158
    %v827 = vunpack.c.l.b16 %v159
    %v828 = vunpack.c.h.b16 %v159
    %v829 = vunpack.c.l.b16 %v160
    %v830 = vunpack.c.h.b16 %v160
    %v831 = vunpack.c.l.b16 %v161
    %v832 = vunpack.c.h.b16 %v161
    %v833 = vunpack.c.l.b16 %v162
    %v834 = vunpack.c.h.b16 %v162
    %v835 = vunpack.c.l.b16 %v163
    %v836 = vunpack.c.h.b16 %v163
    %v837 = vunpack.c.l.b16 %v164
    %v838 = vunpack.c.h.b16 %v164
    %v839 = vunpack.c.l.b16 %v165
    %v840 = vunpack.c.h.b16 %v165
    %v841 = vunpack.c.l.b16 %v166
    %v842 = vunpack.c.h.b16 %v166
    %v843 = vunpack.c.l.b16 %v167
    %v844 = vunpack.c.h.b16 %v167
    %v845 = vunpack.c.l.b16 %v168
    %v846 = vunpack.c.h.b16 %v168
    %v847 = vunpack.c.l.b16 %v169
    %v848 = vunpack.c.h.b16 %v169
    %v849 = vunpack.c.l.b16 %v170
    %v850 = vunpack.c.h.b16 %v170
    %v851 = vunpack.c.l.b16 %v171
    %v852 = vunpack.c.h.b16 %v171
    %v853 = vunpack.c.l.b16 %v172
    %v854 = vunpack.c.h.b16 %v172
    %v855 = vunpack.c.l.b16 %v173
    %v856 = vunpack.c.h.b16 %v173
    %v857 = vunpack.c.l.b16 %v174
    %v858 = vunpack.c.h.b16 %v174
    %v859 = vunpack.c.l.b16 %v175
    %v860 = vunpack.c.h.b16 %v175
    %v861 = vunpack.c.l.b16 %v176
    %v862 = vunpack.c.h.b16 %v176
    %v863 = vunpack.c.l.b16 %v177
    %v864 = vunpack.c.h.b16 %v177
    %v865 = vunpack.c.l.b16 %v178
    %v866 = vunpack.c.h.b16 %v178
    %v867 = vunpack.c.l.b16 %v179
    %v868 = vunpack.c.h.b16 %v179
    %v869 = vunpack.c.l.b16 %v180
    %v870 = vunpack.c.h.b16 %v180
    %v871 = vunpack.c.l.b16 %v181
    %v872 = vunpack.c.h.b16 %v181
    %v873 = vunpack.c.l.b16 %v182
    %v874 = vunpack.c.h.b16 %v182
    %v875 = vunpack.c.l.b16 %v183
    %v876 = vunpack.c.h.b16 %v183
    %v877 = vunpack.c.l.b16 %v184
    %v878 = vunpack.c.h.b16 %v184
    %v879 = vunpack.c.l.b16 %v185
    %v880 = vunpack.c.h.b16 %v185
    %v881 = vunpack.c.l.b16 %v186
    %v882 = vunpack.c.h.b16 %v186
    %v883 = vunpack.c.l.b16 %v187
    %v884 = vunpack.c.h.b16 %v187
    %v885 = vunpack.c.l.b16 %v188
    %v886 = vunpack.c.h.b16 %v188
    %v887 = vunpack.c.l.b16 %v189
    %v888 = vunpack.c.h.b16 %v189
    %v889 = vunpack.c.l.b16 %v190
    %v890 = vunpack.c.h.b16 %v190
    %v891 = vunpack.c.l.b16 %v191
    %v892 = vunpack.c.h.b16 %v191
    %v893 = vunpack.c.l.b16 %v192
    %v894 = vunpack.c.h.b16 %v192
    %v895 = vunpack.c.l.b16 %v193
    %v896 = vunpack.c.h.b16 %v193
    %v897 = vunpack.c.l.b16 %v194
    %v898 = vunpack.c.h.b16 %v194
    %v899 = vunpack.c.l.b16 %v195
    %v900 = vunpack.c.h.b16 %v195
    %v901 = vunpack.c.l.b16 %v196
    %v902 = vunpack.c.h.b16 %v196
    %v903 = vunpack.c.l.b16 %v197
    %v904 = vunpack.c.h.b16 %v197
    %v905 = vunpack.c.l.b16 %v198
    %v906 = vunpack.c.h.b16 %v198
    %v907 = vunpack.c.l.b16 %v199
    %v908 = vunpack.c.h.b16 %v199
    %v909 = vunpack.c.l.b16 %v200
    %v910 = vunpack.c.h.b16 %v200
    %v911 = vunpack.c.l.b16 %v201
    %v912 = vunpack.c.h.b16 %v201
    %v913 = vunpack.c.l.b16 %v202
    %v914 = vunpack.c.h.b16 %v202
    %v915 = vunpack.c.l.b16 %v203
    %v916 = vunpack.c.h.b16 %v203
    %v917 = vunpack.c.l.b16 %v204
    %v918 = vunpack.c.h.b16 %v204
    %v919 = vunpack.c.l.b16 %v205
    %v920 = vunpack.c.h.b16 %v205
    %v921 = vunpack.c.l.b16 %v206
    %v922 = vunpack.c.h.b16 %v206
    %v923 = vunpack.c.l.b16 %v207
    %v924 = vunpack.c.h.b16 %v207
    %v925 = vunpack.c.l.b16 %v208
    %v926 = vunpack.c.h.b16 %v208
    %v927 = vunpack.c.l.b16 %v209
    %v928 = vunpack.c.h.b16 %v209
    %v929 = vunpack.c.l.b16 %v210
    %v930 = vunpack.c.h.b16 %v210
    %v931 = vunpack.c.l.b16 %v211
    %v932 = vunpack.c.h.b16 %v211
    %v933 = vunpack.c.l.b16 %v212
    %v934 = vunpack.c.h.b16 %v212
    %v935 = vunpack.c.l.b16 %v213
    %v936 = vunpack.c.h.b16 %v213
    %v937 = vunpack.c.l.b16 %v214
    %v938 = vunpack.c.h.b16 %v214
    %v939 = vunpack.c.l.b16 %v215
    %v940 = vunpack.c.h.b16 %v215
    %v941 = vunpack.c.l.b16 %v216
    %v942 = vunpack.c.h.b16 %v216
    %v943 = vunpack.c.l.b16 %v217
    %v944 = vunpack.c.h.b16 %v217
    %v945 = vunpack.c.l.b16 %v218
    %v946 = vunpack.c.h.b16 %v218
    %v947 = vunpack.c.l.b16 %v219
    %v948 = vunpack.c.h.b16 %v219
    %v949 = vunpack.c.l.b16 %v220
    %v950 = vunpack.c.h.b16 %v220
    %v951 = vunpack.c.l.b16 %v221
    %v952 = vunpack.c.h.b16 %v221
    %v953 = vunpack.c.l.b16 %v222
    %v954 = vunpack.c.h.b16 %v222
    %v955 = vunpack.c.l.b16 %v223
    %v956 = vunpack.c.h.b16 %v223
    %v957 = vunpack.c.l.b16 %v224
    %v958 = vunpack.c.h.b16 %v224
    %v959 = vunpack.c.l.b16 %v225
    %v960 = vunpack.c.h.b16 %v225
    %v961 = vunpack.c.l.b16 %v226
    %v962 = vunpack.c.h.b16 %v226
    %v963 = vunpack.c.l.b16 %v227
    %v964 = vunpack.c.h.b16 %v227
    %v965 = vunpack.c.l.b16 %v228
    %v966 = vunpack.c.h.b16 %v228
    %v967 = vunpack.c.l.b16 %v229
    %v968 = vunpack.c.h.b16 %v229
    %v969 = vunpack.c.l.b16 %v230
    %v970 = vunpack.c.h.b16 %v230
    %v971 = vunpack.c.l.b16 %v231
    %v972 = vunpack.c.h.b16 %v231
    %v973 = vunpack.c.l.b16 %v232
    %v974 = vunpack.c.h.b16 %v232
    %v975 = vunpack.c.l.b16 %v233
    %v976 = vunpack.c.h.b16 %v233
    %v977 = vunpack.c.l.b16 %v234
    %v978 = vunpack.c.h.b16 %v234
    %v979 = vunpack.c.l.b16 %v235
    %v980 = vunpack.c.h.b16 %v235
    %v981 = vunpack.c.l.b16 %v236
    %v982 = vunpack.c.h.b16 %v236
    %v983 = vunpack.c.l.b16 %v237
    %v984 = vunpack.c.h.b16 %v237
    %v985 = vunpack.c.l.b16 %v238
    %v986 = vunpack.c.h.b16 %v238
    %v987 = vunpack.c.l.b16 %v239
    %v988 = vunpack.c.h.b16 %v239
    %v989 = vunpack.c.l.b16 %v240
    %v990 = vunpack.c.h.b16 %v240
    %v991 = vunpack.c.l.b16 %v241
    %v992 = vunpack.c.h.b16 %v241
    %v993 = vunpack.c.l.b16 %v242
    %v994 = vunpack.c.h.b16 %v242
    %v995 = vunpack.c.l.b16 %v243
    %v996 = vunpack.c.h.b16 %v243
    %v997 = vunpack.c.l.b16 %v244
    %v998 = vunpack.c.h.b16 %v244
    %v999 = vunpack.c.l.b16 %v245
    %v1000 = vunpack.c.h.b16 %v245
    %v1001 = vunpack.c.l.b16 %v246
    %v1002 = vunpack.c.h.b16 %v246
    %v1003 = vunpack.c.l.b16 %v247
    %v1004 = vunpack.c.h.b16 %v247
    %v1005 = vunpack.c.l.b16 %v248
    %v1006 = vunpack.c.h.b16 %v248
    %v1007 = vunpack.c.l.b16 %v249
    %v1008 = vunpack.c.h.b16 %v249
    %v1009 = vunpack.c.l.b16 %v250
    %v1010 = vunpack.c.h.b16 %v250
    %v1011 = vunpack.c.l.b16 %v251
    %v1012 = vunpack.c.h.b16 %v251
    %v1013 = vunpack.c.l.b16 %v252
    %v1014 = vunpack.c.h.b16 %v252
    %v1015 = vunpack.c.l.b16 %v253
    %v1016 = vunpack.c.h.b16 %v253
    %v1017 = vunpack.c.l.b16 %v254
    %v1018 = vunpack.c.h.b16 %v254
    %v1019 = vunpack.c.l.b16 %v255
    %v1020 = vunpack.c.h.b16 %v255
    %v1021 = vunpack.c.l.b16 %v256
    %v1022 = vunpack.c.h.b16 %v256
    %v1023 = vunpack.c.l.b16 %v257
    %v1024 = vunpack.c.h.b16 %v257
    %v1025 = vunpack.c.l.b16 %v258
    %v1026 = vunpack.c.h.b16 %v258
    %v1027 = vunpack.c.l.b16 %v259
    %v1028 = vunpack.c.h.b16 %v259
    %v1029 = vunpack.c.l.b16 %v260
    %v1030 = vunpack.c.h.b16 %v260
    %v1031 = vunpack.c.l.b16 %v261
    %v1032 = vunpack.c.h.b16 %v261
    %v1033 = vunpack.c.l.b16 %v262
    %v1034 = vunpack.c.h.b16 %v262
    %v1035 = vunpack.c.l.b16 %v263
    %v1036 = vunpack.c.h.b16 %v263
    %v1037 = vunpack.c.l.b16 %v264
    %v1038 = vunpack.c.h.b16 %v264
    %v1039 = vunpack.c.l.b16 %v265
    %v1040 = vunpack.c.h.b16 %v265
    %v1041 = vunpack.c.l.b16 %v266
    %v1042 = vunpack.c.h.b16 %v266
    %v1043 = vunpack.c.l.b16 %v267
    %v1044 = vunpack.c.h.b16 %v267
    %v1045 = vunpack.c.l.b16 %v268
    %v1046 = vunpack.c.h.b16 %v268
    %v1047 = vunpack.c.l.b16 %v269
    %v1048 = vunpack.c.h.b16 %v269
    %v1049 = vunpack.c.l.b16 %v270
    %v1050 = vunpack.c.h.b16 %v270
    %v1051 = vunpack.c.l.b16 %v271
    %v1052 = vunpack.c.h.b16 %v271
    %v1053 = vunpack.c.l.b16 %v272
    %v1054 = vunpack.c.h.b16 %v272
    %v1055 = vunpack.c.l.b16 %v273
    %v1056 = vunpack.c.h.b16 %v273
    %v1057 = vunpack.c.l.b16 %v274
    %v1058 = vunpack.c.h.b16 %v274
    %v1059 = vunpack.c.l.b16 %v275
    %v1060 = vunpack.c.h.b16 %v275
    %v1061 = vunpack.c.l.b16 %v276
    %v1062 = vunpack.c.h.b16 %v276
    %v1063 = vunpack.c.l.b16 %v277
    %v1064 = vunpack.c.h.b16 %v277
    %v1065 = vunpack.c.l.b16 %v278
    %v1066 = vunpack.c.h.b16 %v278
    %v1067 = vunpack.c.l.b16 %v279
    %v1068 = vunpack.c.h.b16 %v279
    %v1069 = vunpack.c.l.b16 %v280
    %v1070 = vunpack.c.h.b16 %v280
    %v1071 = vunpack.c.l.b16 %v281
    %v1072 = vunpack.c.h.b16 %v281
    %v1073 = vunpack.c.l.b16 %v282
    %v1074 = vunpack.c.h.b16 %v282
    %v1075 = vunpack.c.l.b16 %v283
    %v1076 = vunpack.c.h.b16 %v283
    %v1077 = vunpack.c.l.b16 %v284
    %v1078 = vunpack.c.h.b16 %v284
    %v1079 = vunpack.c.l.b16 %v285
    %v1080 = vunpack.c.h.b16 %v285
    %v1081 = vunpack.c.l.b16 %v286
    %v1082 = vunpack.c.h.b16 %v286
    %v1083 = vunpack.c.l.b16 %v287
    %v1084 = vunpack.c.h.b16 %v287
    %v1085 = vunpack.c.l.b16 %v288
    %v1086 = vunpack.c.h.b16 %v288
    %v1087 = vunpack.c.l.b16 %v289
    %v1088 = vunpack.c.h.b16 %v289
    %v1089 = vunpack.c.l.b16 %v290
    %v1090 = vunpack.c.h.b16 %v290
    %v1091 = vunpack.c.l.b16 %v291
    %v1092 = vunpack.c.h.b16 %v291
    %v1093 = vunpack.c.l.b16 %v292
    %v1094 = vunpack.c.h.b16 %v292
    %v1095 = vunpack.c.l.b16 %v293
    %v1096 = vunpack.c.h.b16 %v293
    %v1097 = vunpack.c.l.b16 %v294
    %v1098 = vunpack.c.h.b16 %v294
    %v1099 = vunpack.c.l.b16 %v295
    %v1100 = vunpack.c.h.b16 %v295
    %v1101 = vunpack.c.l.b16 %v296
    %v1102 = vunpack.c.h.b16 %v296
    %v1103 = vunpack.c.l.b16 %v297
    %v1104 = vunpack.c.h.b16 %v297
    %v1105 = vunpack.c.l.b16 %v298
    %v1106 = vunpack.c.h.b16 %v298
    %v1107 = vunpack.c.l.b16 %v299
    %v1108 = vunpack.c.h.b16 %v299
    %v1109 = vunpack.c.l.b16 %v300
    %v1110 = vunpack.c.h.b16 %v300
    %v1111 = vunpack.c.l.b16 %v301
    %v1112 = vunpack.c.h.b16 %v301
    %v1113 = vunpack.c.l.b16 %v302
    %v1114 = vunpack.c.h.b16 %v302
    %v1115 = vunpack.c.l.b16 %v303
    %v1116 = vunpack.c.h.b16 %v303
    %v1117 = vunpack.c.l.b16 %v304
    %v1118 = vunpack.c.h.b16 %v304
    %v1119 = vunpack.c.l.b16 %v305
    %v1120 = vunpack.c.h.b16 %v305
    %v1121 = vunpack.c.l.b16 %v306
    %v1122 = vunpack.c.h.b16 %v306
    %v1123 = vunpack.c.l.b16 %v307
    %v1124 = vunpack.c.h.b16 %v307
    %v1125 = vunpack.c.l.b16 %v308
    %v1126 = vunpack.c.h.b16 %v308
    %v1127 = vpack.c.b16 %v619, %v615
    %v1128 = vpack.c.b16 %v620, %v616
    %v1129 = vpack.c.b16 %v621, %v617
    %v1130 = vpack.c.b16 %v622, %v618
    %v1131 = vpack.c.b16 %v627, %v623
    %v1132 = vpack.c.b16 %v628, %v624
    %v1133 = vpack.c.b16 %v629, %v625
    %v1134 = vpack.c.b16 %v630, %v626
    %v1135 = vpack.c.b16 %v635, %v631
    %v1136 = vpack.c.b16 %v636, %v632
    %v1137 = vpack.c.b16 %v637, %v633
    %v1138 = vpack.c.b16 %v638, %v634
    %v1139 = vpack.c.b16 %v643, %v639
    %v1140 = vpack.c.b16 %v644, %v640
    %v1141 = vpack.c.b16 %v645, %v641
    %v1142 = vpack.c.b16 %v646, %v642
    %v1143 = vpack.c.b16 %v651, %v647
    %v1144 = vpack.c.b16 %v652, %v648
    %v1145 = vpack.c.b16 %v653, %v649
    %v1146 = vpack.c.b16 %v654, %v650
    %v1147 = vpack.c.b16 %v659, %v655
    %v1148 = vpack.c.b16 %v660, %v656
    %v1149 = vpack.c.b16 %v661, %v657
    %v1150 = vpack.c.b16 %v662, %v658
    %v1151 = vpack.c.b16 %v667, %v663
    %v1152 = vpack.c.b16 %v668, %v664
    %v1153 = vpack.c.b16 %v669, %v665
    %v1154 = vpack.c.b16 %v670, %v666
    %v1155 = vpack.c.b16 %v675, %v671
    %v1156 = vpack.c.b16 %v676, %v672
    %v1157 = vpack.c.b16 %v677, %v673
    %v1158 = vpack.c.b16 %v678, %v674
    %v1159 = vpack.c.b16 %v683, %v679
    %v1160 = vpack.c.b16 %v684, %v680
    %v1161 = vpack.c.b16 %v685, %v681
    %v1162 = vpack.c.b16 %v686, %v682
    %v1163 = vpack.c.b16 %v691, %v687
    %v1164 = vpack.c.b16 %v692, %v688
    %v1165 = vpack.c.b16 %v693, %v689
    %v1166 = vpack.c.b16 %v694, %v690
    %v1167 = vpack.c.b16 %v699, %v695
    %v1168 = vpack.c.b16 %v700, %v696
    %v1169 = vpack.c.b16 %v701, %v697
    %v1170 = vpack.c.b16 %v702, %v698
    %v1171 = vpack.c.b16 %v707, %v703
    %v1172 = vpack.c.b16 %v708, %v704
    %v1173 = vpack.c.b16 %v709, %v705
    %v1174 = vpack.c.b16 %v710, %v706
    %v1175 = vpack.c.b16 %v715, %v711
    %v1176 = vpack.c.b16 %v716, %v712
    %v1177 = vpack.c.b16 %v717, %v713
    %v1178 = vpack.c.b16 %v718, %v714
    %v1179 = vpack.c.b16 %v723, %v719
    %v1180 = vpack.c.b16 %v724, %v720
    %v1181 = vpack.c.b16 %v725, %v721
    %v1182 = vpack.c.b16 %v726, %v722
    %v1183 = vpack.c.b16 %v731, %v727
    %v1184 = vpack.c.b16 %v732, %v728
    %v1185 = vpack.c.b16 %v733, %v729
    %v1186 = vpack.c.b16 %v734, %v730
    %v1187 = vpack.c.b16 %v739, %v735
    %v1188 = vpack.c.b16 %v740, %v736
    %v1189 = vpack.c.b16 %v741, %v737
    %v1190 = vpack.c.b16 %v742, %v738
    %v1191 = vpack.c.b16 %v747, %v743
    %v1192 = vpack.c.b16 %v748, %v744
    %v1193 = vpack.c.b16 %v749, %v745
    %v1194 = vpack.c.b16 %v750, %v746
    %v1195 = vpack.c.b16 %v755, %v751
    %v1196 = vpack.c.b16 %v756, %v752
    %v1197 = vpack.c.b16 %v757, %v753
    %v1198 = vpack.c.b16 %v758, %v754
    %v1199 = vpack.c.b16 %v763, %v759
    %v1200 = vpack.c.b16 %v764, %v760
    %v1201 = vpack.c.b16 %v765, %v761
    %v1202 = vpack.c.b16 %v766, %v762
    %v1203 = vpack.c.b16 %v771, %v767
    %v1204 = vpack.c.b16 %v772, %v768
    %v1205 = vpack.c.b16 %v773, %v769
    %v1206 = vpack.c.b16 %v774, %v770
    %v1207 = vpack.c.b16 %v779, %v775
    %v1208 = vpack.c.b16 %v780, %v776
    %v1209 = vpack.c.b16 %v781, %v777
    %v1210 = vpack.c.b16 %v782, %v778
    %v1211 = vpack.c.b16 %v787, %v783
    %v1212 = vpack.c.b16 %v788, %v784
    %v1213 = vpack.c.b16 %v789, %v785
    %v1214 = vpack.c.b16 %v790, %v786
    %v1215 = vpack.c.b16 %v795, %v791
    %v1216 = vpack.c.b16 %v796, %v792
    %v1217 = vpack.c.b16 %v797, %v793
    %v1218 = vpack.c.b16 %v798, %v794
    %v1219 = vpack.c.b16 %v803, %v799
    %v1220 = vpack.c.b16 %v804, %v800
    %v1221 = vpack.c.b16 %v805, %v801
    %v1222 = vpack.c.b16 %v806, %v802
    %v1223 = vpack.c.b16 %v811, %v807
    %v1224 = vpack.c.b16 %v812, %v808
    %v1225 = vpack.c.b16 %v813, %v809
    %v1226 = vpack.c.b16 %v814, %v810
    %v1227 = vpack.c.b16 %v819, %v815
    %v1228 = vpack.c.b16 %v820, %v816
    %v1229 = vpack.c.b16 %v821, %v817
    %v1230 = vpack.c.b16 %v822, %v818
    %v1231 = vpack.c.b16 %v827, %v823
    %v1232 = vpack.c.b16 %v828, %v824
    %v1233 = vpack.c.b16 %v829, %v825
    %v1234 = vpack.c.b16 %v830, %v826
    %v1235 = vpack.c.b16 %v835, %v831
    %v1236 = vpack.c.b16 %v836, %v832
    %v1237 = vpack.c.b16 %v837, %v833
    %v1238 = vpack.c.b16 %v838, %v834
    %v1239 = vpack.c.b16 %v843, %v839
    %v1240 = vpack.c.b16 %v844, %v840
    %v1241 = vpack.c.b16 %v845, %v841
    %v1242 = vpack.c.b16 %v846, %v842
    %v1243 = vpack.c.b16 %v851, %v847
    %v1244 = vpack.c.b16 %v852, %v848
    %v1245 = vpack.c.b16 %v853, %v849
    %v1246 = vpack.c.b16 %v854, %v850
    %v1247 = vpack.c.b16 %v859, %v855
    %v1248 = vpack.c.b16 %v860, %v856
    %v1249 = vpack.c.b16 %v861, %v857
    %v1250 = vpack.c.b16 %v862, %v858
    %v1251 = vpack.c.b16 %v867, %v863
    %v1252 = vpack.c.b16 %v868, %v864
    %v1253 = vpack.c.b16 %v869, %v865
    %v1254 = vpack.c.b16 %v870, %v866
    %v1255 = vpack.c.b16 %v875, %v871
    %v1256 = vpack.c.b16 %v876, %v872
    %v1257 = vpack.c.b16 %v877, %v873
    %v1258 = vpack.c.b16 %v878, %v874
    %v1259 = vpack.c.b16 %v883, %v879
    %v1260 = vpack.c.b16 %v884, %v880
    %v1261 = vpack.c.b16 %v885, %v881
    %v1262 = vpack.c.b16 %v886, %v882
    %v1263 = vpack.c.b16 %v891, %v887
    %v1264 = vpack.c.b16 %v892, %v888
    %v1265 = vpack.c.b16 %v893, %v889
    %v1266 = vpack.c.b16 %v894, %v890
    %v1267 = vpack.c.b16 %v899, %v895
    %v1268 = vpack.c.b16 %v900, %v896
    %v1269 = vpack.c.b16 %v901, %v897
    %v1270 = vpack.c.b16 %v902, %v898
    %v1271 = vpack.c.b16 %v907, %v903
    %v1272 = vpack.c.b16 %v908, %v904
    %v1273 = vpack.c.b16 %v909, %v905
    %v1274 = vpack.c.b16 %v910, %v906
    %v1275 = vpack.c.b16 %v915, %v911
    %v1276 = vpack.c.b16 %v916, %v912
    %v1277 = vpack.c.b16 %v917, %v913
    %v1278 = vpack.c.b16 %v918, %v914
    %v1279 = vpack.c.b16 %v923, %v919
    %v1280 = vpack.c.b16 %v924, %v920
    %v1281 = vpack.c.b16 %v925, %v921
    %v1282 = vpack.c.b16 %v926, %v922
    %v1283 = vpack.c.b16 %v931, %v927
    %v1284 = vpack.c.b16 %v932, %v928
    %v1285 = vpack.c.b16 %v933, %v929
    %v1286 = vpack.c.b16 %v934, %v930
    %v1287 = vpack.c.b16 %v939, %v935
    %v1288 = vpack.c.b16 %v940, %v936
    %v1289 = vpack.c.b16 %v941, %v937
    %v1290 = vpack.c.b16 %v942, %v938
    %v1291 = vpack.c.b16 %v947, %v943
    %v1292 = vpack.c.b16 %v948, %v944
    %v1293 = vpack.c.b16 %v949, %v945
    %v1294 = vpack.c.b16 %v950, %v946
    %v1295 = vpack.c.b16 %v955, %v951
    %v1296 = vpack.c.b16 %v956, %v952
    %v1297 = vpack.c.b16 %v957, %v953
    %v1298 = vpack.c.b16 %v958, %v954
    %v1299 = vpack.c.b16 %v963, %v959
    %v1300 = vpack.c.b16 %v964, %v960
    %v1301 = vpack.c.b16 %v965, %v961
    %v1302 = vpack.c.b16 %v966, %v962
    %v1303 = vpack.c.b16 %v971, %v967
    %v1304 = vpack.c.b16 %v972, %v968
    %v1305 = vpack.c.b16 %v973, %v969
    %v1306 = vpack.c.b16 %v974, %v970
    %v1307 = vpack.c.b16 %v979, %v975
    %v1308 = vpack.c.b16 %v980, %v976
    %v1309 = vpack.c.b16 %v981, %v977
    %v1310 = vpack.c.b16 %v982, %v978
    %v1311 = vpack.c.b16 %v987, %v983
    %v1312 = vpack.c.b16 %v988, %v984
    %v1313 = vpack.c.b16 %v989, %v985
    %v1314 = vpack.c.b16 %v990, %v986
    %v1315 = vpack.c.b16 %v995, %v991
    %v1316 = vpack.c.b16 %v996, %v992
    %v1317 = vpack.c.b16 %v997, %v993
    %v1318 = vpack.c.b16 %v998, %v994
    %v1319 = vpack.c.b16 %v1003, %v999
    %v1320 = vpack.c.b16 %v1004, %v1000
    %v1321 = vpack.c.b16 %v1005, %v1001
    %v1322 = vpack.c.b16 %v1006, %v1002
    %v1323 = vpack.c.b16 %v1011, %v1007
    %v1324 = vpack.c.b16 %v1012, %v1008
    %v1325 = vpack.c.b16 %v1013, %v1009
    %v1326 = vpack.c.b16 %v1014, %v1010
    %v1327 = vpack.c.b16 %v1019, %v1015
    %v1328 = vpack.c.b16 %v1020, %v1016
    %v1329 = vpack.c.b16 %v1021, %v1017
    %v1330 = vpack.c.b16 %v1022, %v1018
    %v1331 = vpack.c.b16 %v1027, %v1023
    %v1332 = vpack.c.b16 %v1028, %v1024
    %v1333 = vpack.c.b16 %v1029, %v1025
    %v1334 = vpack.c.b16 %v1030, %v1026
    %v1335 = vpack.c.b16 %v1035, %v1031
    %v1336 = vpack.c.b16 %v1036, %v1032
    %v1337 = vpack.c.b16 %v1037, %v1033
    %v1338 = vpack.c.b16 %v1038, %v1034
    %v1339 = vpack.c.b16 %v1043, %v1039
    %v1340 = vpack.c.b16 %v1044, %v1040
    %v1341 = vpack.c.b16 %v1045, %v1041
    %v1342 = vpack.c.b16 %v1046, %v1042
    %v1343 = vpack.c.b16 %v1051, %v1047
    %v1344 = vpack.c.b16 %v1052, %v1048
    %v1345 = vpack.c.b16 %v1053, %v1049
    %v1346 = vpack.c.b16 %v1054, %v1050
    %v1347 = vpack.c.b16 %v1059, %v1055
    %v1348 = vpack.c.b16 %v1060, %v1056
    %v1349 = vpack.c.b16 %v1061, %v1057
    %v1350 = vpack.c.b16 %v1062, %v1058
    %v1351 = vpack.c.b16 %v1067, %v1063
    %v1352 = vpack.c.b16 %v1068, %v1064
    %v1353 = vpack.c.b16 %v1069, %v1065
    %v1354 = vpack.c.b16 %v1070, %v1066
    %v1355 = vpack.c.b16 %v1075, %v1071
    %v1356 = vpack.c.b16 %v1076, %v1072
    %v1357 = vpack.c.b16 %v1077, %v1073
    %v1358 = vpack.c.b16 %v1078, %v1074
    %v1359 = vpack.c.b16 %v1083, %v1079
    %v1360 = vpack.c.b16 %v1084, %v1080
    %v1361 = vpack.c.b16 %v1085, %v1081
    %v1362 = vpack.c.b16 %v1086, %v1082
    %v1363 = vpack.c.b16 %v1091, %v1087
    %v1364 = vpack.c.b16 %v1092, %v1088
    %v1365 = vpack.c.b16 %v1093, %v1089
    %v1366 = vpack.c.b16 %v1094, %v1090
    %v1367 = vpack.c.b16 %v1099, %v1095
    %v1368 = vpack.c.b16 %v1100, %v1096
    %v1369 = vpack.c.b16 %v1101, %v1097
    %v1370 = vpack.c.b16 %v1102, %v1098
    %v1371 = vpack.c.b16 %v1107, %v1103
    %v1372 = vpack.c.b16 %v1108, %v1104
    %v1373 = vpack.c.b16 %v1109, %v1105
    %v1374 = vpack.c.b16 %v1110, %v1106
    %v1375 = vpack.c.b16 %v1115, %v1111
    %v1376 = vpack.c.b16 %v1116, %v1112
    %v1377 = vpack.c.b16 %v1117, %v1113
    %v1378 = vpack.c.b16 %v1118, %v1114
    %v1379 = vpack.c.b16 %v1123, %v1119
    %v1380 = vpack.c.b16 %v1124, %v1120
    %v1381 = vpack.c.b16 %v1125, %v1121
    %v1382 = vpack.c.b16 %v1126, %v1122
    %1639 = vmatprep.subr.bf16.mxu0 %v1156
    %1640 = vmatpush1.bf16.msra.mxu0 %v1155
    %1641 = vmatprep.subr.bf16.mxu0 %v1152
    %1642 = vmatpush1.bf16.msra.mxu0 %v1151
    %1643 = vmatprep.subr.bf16.mxu0 %v1148
    %1644 = vmatpush1.bf16.msra.mxu0 %v1147
    %1645 = vmatprep.subr.bf16.mxu0 %v1144
    %1646 = vmatpush1.bf16.msra.mxu0 %v1143
    %1647 = vmatprep.subr.bf16.mxu0 %v1140
    %1648 = vmatpush1.bf16.msra.mxu0 %v1139
    %1649 = vmatprep.subr.bf16.mxu0 %v1136
    %1650 = vmatpush1.bf16.msra.mxu0 %v1135
    %1651 = vmatprep.subr.bf16.mxu0 %v1132
    %1652 = vmatpush1.bf16.msra.mxu0 %v1131
    %1653 = vmatprep.subr.bf16.mxu0 %v1128
    %1654 = vmatpush1.bf16.msra.mxu0 %v1127
    %1655 = vmatprep.subr.bf16.mxu0 %v1188
    %1656 = vmatpush2.bf16.msra.mxu0 %v1187
    %1657 = vmatprep.subr.bf16.mxu0 %v1184
    %1658 = vmatpush2.bf16.msra.mxu0 %v1183
    %1659 = vmatprep.subr.bf16.mxu0 %v1180
    %1660 = vmatpush2.bf16.msra.mxu0 %v1179
    %1661 = vmatprep.subr.bf16.mxu0 %v1176
    %1662 = vmatpush2.bf16.msra.mxu0 %v1175
    %1663 = vmatprep.subr.bf16.mxu0 %v1172
    %1664 = vmatpush2.bf16.msra.mxu0 %v1171
    %1665 = vmatprep.subr.bf16.mxu0 %v1168
    %1666 = vmatpush2.bf16.msra.mxu0 %v1167
    %1667 = vmatprep.subr.bf16.mxu0 %v1164
    %1668 = vmatpush2.bf16.msra.mxu0 %v1163
    %1669 = vmatprep.subr.bf16.mxu0 %v1160
    %1670 = vmatpush2.bf16.msra.mxu0 %v1159
    %1671 = vmatprep.mubr.bf16.mxu0 %v344
    %1672 = vmatmul.mubr.bf16.gmra.mxu0 %v343
    %v1673 = vpop.f32.mrf.mxu0
    %v1674 = vadd.f32 %v314, %v1673
    %v1675 = vpop.f32.mrf.mxu0
    %v1676 = vadd.f32 %v318, %v1675
    %v1677 = vpop.f32.mrf.mxu0
    %v1678 = vpop.f32.mrf.mxu0
    %1679 = vdwg.mxu0
    %1680 = vmatprep.subr.bf16.mxu0 %v1220
    %1681 = vmatpush1.bf16.msra.mxu0 %v1219
    %1682 = vmatprep.subr.bf16.mxu0 %v1216
    %1683 = vmatpush1.bf16.msra.mxu0 %v1215
    %1684 = vmatprep.subr.bf16.mxu0 %v1212
    %1685 = vmatpush1.bf16.msra.mxu0 %v1211
    %1686 = vmatprep.subr.bf16.mxu0 %v1208
    %1687 = vmatpush1.bf16.msra.mxu0 %v1207
    %1688 = vmatprep.subr.bf16.mxu0 %v1204
    %1689 = vmatpush1.bf16.msra.mxu0 %v1203
    %1690 = vmatprep.subr.bf16.mxu0 %v1200
    %1691 = vmatpush1.bf16.msra.mxu0 %v1199
    %1692 = vmatprep.subr.bf16.mxu0 %v1196
    %1693 = vmatpush1.bf16.msra.mxu0 %v1195
    %1694 = vmatprep.subr.bf16.mxu0 %v1192
    %1695 = vmatpush1.bf16.msra.mxu0 %v1191
    %1696 = vmatprep.subr.bf16.mxu0 %v1252
    %1697 = vmatpush2.bf16.msra.mxu0 %v1251
    %1698 = vmatprep.subr.bf16.mxu0 %v1248
    %1699 = vmatpush2.bf16.msra.mxu0 %v1247
    %1700 = vmatprep.subr.bf16.mxu0 %v1244
    %1701 = vmatpush2.bf16.msra.mxu0 %v1243
    %1702 = vmatprep.subr.bf16.mxu0 %v1240
    %1703 = vmatpush2.bf16.msra.mxu0 %v1239
    %1704 = vmatprep.subr.bf16.mxu0 %v1236
    %1705 = vmatpush2.bf16.msra.mxu0 %v1235
    %1706 = vmatprep.subr.bf16.mxu0 %v1232
    %1707 = vmatpush2.bf16.msra.mxu0 %v1231
    %1708 = vmatprep.subr.bf16.mxu0 %v1228
    %1709 = vmatpush2.bf16.msra.mxu0 %v1227
    %1710 = vmatprep.subr.bf16.mxu0 %v1224
    %1711 = vmatpush2.bf16.msra.mxu0 %v1223
    %1712 = vmatprep.mubr.bf16.mxu0 %v346
    %1713 = vmatmul.mubr.bf16.gmra.mxu0 %v345
    %v1714 = vpop.f32.mrf.mxu0
    %v1715 = vadd.f32 %v1674, %v1714
    %v1716 = vpop.f32.mrf.mxu0
    %v1717 = vadd.f32 %v1676, %v1716
    %v1718 = vpop.f32.mrf.mxu0
    %v1719 = vpop.f32.mrf.mxu0
    %1720 = vdwg.mxu0
    %1721 = vmatprep.subr.bf16.mxu0 %v1284
    %1722 = vmatpush1.bf16.msra.mxu0 %v1283
    %1723 = vmatprep.subr.bf16.mxu0 %v1280
    %1724 = vmatpush1.bf16.msra.mxu0 %v1279
    %1725 = vmatprep.subr.bf16.mxu0 %v1276
    %1726 = vmatpush1.bf16.msra.mxu0 %v1275
    %1727 = vmatprep.subr.bf16.mxu0 %v1272
    %1728 = vmatpush1.bf16.msra.mxu0 %v1271
    %1729 = vmatprep.subr.bf16.mxu0 %v1268
    %1730 = vmatpush1.bf16.msra.mxu0 %v1267
    %1731 = vmatprep.subr.bf16.mxu0 %v1264
    %1732 = vmatpush1.bf16.msra.mxu0 %v1263
    %1733 = vmatprep.subr.bf16.mxu0 %v1260
    %1734 = vmatpush1.bf16.msra.mxu0 %v1259
    %1735 = vmatprep.subr.bf16.mxu0 %v1256
    %1736 = vmatpush1.bf16.msra.mxu0 %v1255
    %1737 = vmatprep.subr.bf16.mxu0 %v1316
    %1738 = vmatpush2.bf16.msra.mxu0 %v1315
    %1739 = vmatprep.subr.bf16.mxu0 %v1312
    %1740 = vmatpush2.bf16.msra.mxu0 %v1311
    %1741 = vmatprep.subr.bf16.mxu0 %v1308
    %1742 = vmatpush2.bf16.msra.mxu0 %v1307
    %1743 = vmatprep.subr.bf16.mxu0 %v1304
    %1744 = vmatpush2.bf16.msra.mxu0 %v1303
    %1745 = vmatprep.subr.bf16.mxu0 %v1300
    %1746 = vmatpush2.bf16.msra.mxu0 %v1299
    %1747 = vmatprep.subr.bf16.mxu0 %v1296
    %1748 = vmatpush2.bf16.msra.mxu0 %v1295
    %1749 = vmatprep.subr.bf16.mxu0 %v1292
    %1750 = vmatpush2.bf16.msra.mxu0 %v1291
    %1751 = vmatprep.subr.bf16.mxu0 %v1288
    %1752 = vmatpush2.bf16.msra.mxu0 %v1287
    %1753 = vmatprep.mubr.bf16.mxu0 %v348
    %1754 = vmatmul.mubr.bf16.gmra.mxu0 %v347
    %v1755 = vpop.f32.mrf.mxu0
    %v1756 = vadd.f32 %v1715, %v1755
    %v1757 = vpop.f32.mrf.mxu0
    %v1758 = vadd.f32 %v1717, %v1757
    %v1759 = vpop.f32.mrf.mxu0
    %v1760 = vpop.f32.mrf.mxu0
    %1761 = vdwg.mxu0
    %1762 = vmatprep.subr.bf16.mxu0 %v1348
    %1763 = vmatpush1.bf16.msra.mxu0 %v1347
    %1764 = vmatprep.subr.bf16.mxu0 %v1344
    %1765 = vmatpush1.bf16.msra.mxu0 %v1343
    %1766 = vmatprep.subr.bf16.mxu0 %v1340
    %1767 = vmatpush1.bf16.msra.mxu0 %v1339
    %1768 = vmatprep.subr.bf16.mxu0 %v1336
    %1769 = vmatpush1.bf16.msra.mxu0 %v1335
    %1770 = vmatprep.subr.bf16.mxu0 %v1332
    %1771 = vmatpush1.bf16.msra.mxu0 %v1331
    %1772 = vmatprep.subr.bf16.mxu0 %v1328
    %1773 = vmatpush1.bf16.msra.mxu0 %v1327
    %1774 = vmatprep.subr.bf16.mxu0 %v1324
    %1775 = vmatpush1.bf16.msra.mxu0 %v1323
    %1776 = vmatprep.subr.bf16.mxu0 %v1320
    %1777 = vmatpush1.bf16.msra.mxu0 %v1319
    %1778 = vmatprep.subr.bf16.mxu0 %v1380
    %1779 = vmatpush2.bf16.msra.mxu0 %v1379
    %1780 = vmatprep.subr.bf16.mxu0 %v1376
    %1781 = vmatpush2.bf16.msra.mxu0 %v1375
    %1782 = vmatprep.subr.bf16.mxu0 %v1372
    %1783 = vmatpush2.bf16.msra.mxu0 %v1371
    %1784 = vmatprep.subr.bf16.mxu0 %v1368
    %1785 = vmatpush2.bf16.msra.mxu0 %v1367
    %1786 = vmatprep.subr.bf16.mxu0 %v1364
    %1787 = vmatpush2.bf16.msra.mxu0 %v1363
    %1788 = vmatprep.subr.bf16.mxu0 %v1360
    %1789 = vmatpush2.bf16.msra.mxu0 %v1359
    %1790 = vmatprep.subr.bf16.mxu0 %v1356
    %1791 = vmatpush2.bf16.msra.mxu0 %v1355
    %1792 = vmatprep.subr.bf16.mxu0 %v1352
    %1793 = vmatpush2.bf16.msra.mxu0 %v1351
    %1794 = vmatprep.mubr.bf16.mxu0 %v350
    %1795 = vmatmul.mubr.bf16.gmra.mxu0 %v349
    %v1796 = vpop.f32.mrf.mxu0
    %v1797 = vadd.f32 %v1756, %v1796
    %v1798 = vpop.f32.mrf.mxu0
    %v1799 = vadd.f32 %v1758, %v1798
    %v1800 = vpop.f32.mrf.mxu0
    %v1801 = vpop.f32.mrf.mxu0
    %1802 = vdwg.mxu0
    %1803 = vmatprep.subr.bf16.mxu0 %v1158
    %1804 = vmatpush1.bf16.msra.mxu0 %v1157
    %1805 = vmatprep.subr.bf16.mxu0 %v1154
    %1806 = vmatpush1.bf16.msra.mxu0 %v1153
    %1807 = vmatprep.subr.bf16.mxu0 %v1150
    %1808 = vmatpush1.bf16.msra.mxu0 %v1149
    %1809 = vmatprep.subr.bf16.mxu0 %v1146
    %1810 = vmatpush1.bf16.msra.mxu0 %v1145
    %1811 = vmatprep.subr.bf16.mxu0 %v1142
    %1812 = vmatpush1.bf16.msra.mxu0 %v1141
    %1813 = vmatprep.subr.bf16.mxu0 %v1138
    %1814 = vmatpush1.bf16.msra.mxu0 %v1137
    %1815 = vmatprep.subr.bf16.mxu0 %v1134
    %1816 = vmatpush1.bf16.msra.mxu0 %v1133
    %1817 = vmatprep.subr.bf16.mxu0 %v1130
    %1818 = vmatpush1.bf16.msra.mxu0 %v1129
    %1819 = vmatprep.subr.bf16.mxu0 %v1190
    %1820 = vmatpush2.bf16.msra.mxu0 %v1189
    %1821 = vmatprep.subr.bf16.mxu0 %v1186
    %1822 = vmatpush2.bf16.msra.mxu0 %v1185
    %1823 = vmatprep.subr.bf16.mxu0 %v1182
    %1824 = vmatpush2.bf16.msra.mxu0 %v1181
    %1825 = vmatprep.subr.bf16.mxu0 %v1178
    %1826 = vmatpush2.bf16.msra.mxu0 %v1177
    %1827 = vmatprep.subr.bf16.mxu0 %v1174
    %1828 = vmatpush2.bf16.msra.mxu0 %v1173
    %1829 = vmatprep.subr.bf16.mxu0 %v1170
    %1830 = vmatpush2.bf16.msra.mxu0 %v1169
    %1831 = vmatprep.subr.bf16.mxu0 %v1166
    %1832 = vmatpush2.bf16.msra.mxu0 %v1165
    %1833 = vmatprep.subr.bf16.mxu0 %v1162
    %1834 = vmatpush2.bf16.msra.mxu0 %v1161
    %1835 = vmatprep.mubr.bf16.mxu0 %v344
    %1836 = vmatmul.mubr.bf16.gmra.mxu0 %v343
    %v1837 = vpop.f32.mrf.mxu0
    %v1838 = vadd.f32 %v322, %v1837
    %v1839 = vpop.f32.mrf.mxu0
    %v1840 = vadd.f32 %v326, %v1839
    %v1841 = vpop.f32.mrf.mxu0
    %v1842 = vpop.f32.mrf.mxu0
    %1843 = vdwg.mxu0
    %1844 = vmatprep.subr.bf16.mxu0 %v1222
    %1845 = vmatpush1.bf16.msra.mxu0 %v1221
    %1846 = vmatprep.subr.bf16.mxu0 %v1218
    %1847 = vmatpush1.bf16.msra.mxu0 %v1217
    %1848 = vmatprep.subr.bf16.mxu0 %v1214
    %1849 = vmatpush1.bf16.msra.mxu0 %v1213
    %1850 = vmatprep.subr.bf16.mxu0 %v1210
    %1851 = vmatpush1.bf16.msra.mxu0 %v1209
    %1852 = vmatprep.subr.bf16.mxu0 %v1206
    %1853 = vmatpush1.bf16.msra.mxu0 %v1205
    %1854 = vmatprep.subr.bf16.mxu0 %v1202
    %1855 = vmatpush1.bf16.msra.mxu0 %v1201
    %1856 = vmatprep.subr.bf16.mxu0 %v1198
    %1857 = vmatpush1.bf16.msra.mxu0 %v1197
    %1858 = vmatprep.subr.bf16.mxu0 %v1194
    %1859 = vmatpush1.bf16.msra.mxu0 %v1193
    %1860 = vmatprep.subr.bf16.mxu0 %v1254
    %1861 = vmatpush2.bf16.msra.mxu0 %v1253
    %1862 = vmatprep.subr.bf16.mxu0 %v1250
    %1863 = vmatpush2.bf16.msra.mxu0 %v1249
    %1864 = vmatprep.subr.bf16.mxu0 %v1246
    %1865 = vmatpush2.bf16.msra.mxu0 %v1245
    %1866 = vmatprep.subr.bf16.mxu0 %v1242
    %1867 = vmatpush2.bf16.msra.mxu0 %v1241
    %1868 = vmatprep.subr.bf16.mxu0 %v1238
    %1869 = vmatpush2.bf16.msra.mxu0 %v1237
    %1870 = vmatprep.subr.bf16.mxu0 %v1234
    %1871 = vmatpush2.bf16.msra.mxu0 %v1233
    %1872 = vmatprep.subr.bf16.mxu0 %v1230
    %1873 = vmatpush2.bf16.msra.mxu0 %v1229
    %1874 = vmatprep.subr.bf16.mxu0 %v1226
    %1875 = vmatpush2.bf16.msra.mxu0 %v1225
    %1876 = vmatprep.mubr.bf16.mxu0 %v346
    %1877 = vmatmul.mubr.bf16.gmra.mxu0 %v345
    %v1878 = vpop.f32.mrf.mxu0
    %v1879 = vadd.f32 %v1838, %v1878
    %v1880 = vpop.f32.mrf.mxu0
    %v1881 = vadd.f32 %v1840, %v1880
    %v1882 = vpop.f32.mrf.mxu0
    %v1883 = vpop.f32.mrf.mxu0
    %1884 = vdwg.mxu0
    %1885 = vmatprep.subr.bf16.mxu0 %v1286
    %1886 = vmatpush1.bf16.msra.mxu0 %v1285
    %1887 = vmatprep.subr.bf16.mxu0 %v1282
    %1888 = vmatpush1.bf16.msra.mxu0 %v1281
    %1889 = vmatprep.subr.bf16.mxu0 %v1278
    %1890 = vmatpush1.bf16.msra.mxu0 %v1277
    %1891 = vmatprep.subr.bf16.mxu0 %v1274
    %1892 = vmatpush1.bf16.msra.mxu0 %v1273
    %1893 = vmatprep.subr.bf16.mxu0 %v1270
    %1894 = vmatpush1.bf16.msra.mxu0 %v1269
    %1895 = vmatprep.subr.bf16.mxu0 %v1266
    %1896 = vmatpush1.bf16.msra.mxu0 %v1265
    %1897 = vmatprep.subr.bf16.mxu0 %v1262
    %1898 = vmatpush1.bf16.msra.mxu0 %v1261
    %1899 = vmatprep.subr.bf16.mxu0 %v1258
    %1900 = vmatpush1.bf16.msra.mxu0 %v1257
    %1901 = vmatprep.subr.bf16.mxu0 %v1318
    %1902 = vmatpush2.bf16.msra.mxu0 %v1317
    %1903 = vmatprep.subr.bf16.mxu0 %v1314
    %1904 = vmatpush2.bf16.msra.mxu0 %v1313
    %1905 = vmatprep.subr.bf16.mxu0 %v1310
    %1906 = vmatpush2.bf16.msra.mxu0 %v1309
    %1907 = vmatprep.subr.bf16.mxu0 %v1306
    %1908 = vmatpush2.bf16.msra.mxu0 %v1305
    %1909 = vmatprep.subr.bf16.mxu0 %v1302
    %1910 = vmatpush2.bf16.msra.mxu0 %v1301
    %1911 = vmatprep.subr.bf16.mxu0 %v1298
    %1912 = vmatpush2.bf16.msra.mxu0 %v1297
    %1913 = vmatprep.subr.bf16.mxu0 %v1294
    %1914 = vmatpush2.bf16.msra.mxu0 %v1293
    %1915 = vmatprep.subr.bf16.mxu0 %v1290
    %1916 = vmatpush2.bf16.msra.mxu0 %v1289
    %1917 = vmatprep.mubr.bf16.mxu0 %v348
    %1918 = vmatmul.mubr.bf16.gmra.mxu0 %v347
    %v1919 = vpop.f32.mrf.mxu0
    %v1920 = vadd.f32 %v1879, %v1919
    %v1921 = vpop.f32.mrf.mxu0
    %v1922 = vadd.f32 %v1881, %v1921
    %v1923 = vpop.f32.mrf.mxu0
    %v1924 = vpop.f32.mrf.mxu0
    %1925 = vdwg.mxu0
    %1926 = vmatprep.subr.bf16.mxu0 %v1350
    %1927 = vmatpush1.bf16.msra.mxu0 %v1349
    %1928 = vmatprep.subr.bf16.mxu0 %v1346
    %1929 = vmatpush1.bf16.msra.mxu0 %v1345
    %1930 = vmatprep.subr.bf16.mxu0 %v1342
    %1931 = vmatpush1.bf16.msra.mxu0 %v1341
    %1932 = vmatprep.subr.bf16.mxu0 %v1338
    %1933 = vmatpush1.bf16.msra.mxu0 %v1337
    %1934 = vmatprep.subr.bf16.mxu0 %v1334
    %1935 = vmatpush1.bf16.msra.mxu0 %v1333
    %1936 = vmatprep.subr.bf16.mxu0 %v1330
    %1937 = vmatpush1.bf16.msra.mxu0 %v1329
    %1938 = vmatprep.subr.bf16.mxu0 %v1326
    %1939 = vmatpush1.bf16.msra.mxu0 %v1325
    %1940 = vmatprep.subr.bf16.mxu0 %v1322
    %1941 = vmatpush1.bf16.msra.mxu0 %v1321
    %1942 = vmatprep.subr.bf16.mxu0 %v1382
    %1943 = vmatpush2.bf16.msra.mxu0 %v1381
    %1944 = vmatprep.subr.bf16.mxu0 %v1378
    %1945 = vmatpush2.bf16.msra.mxu0 %v1377
    %1946 = vmatprep.subr.bf16.mxu0 %v1374
    %1947 = vmatpush2.bf16.msra.mxu0 %v1373
    %1948 = vmatprep.subr.bf16.mxu0 %v1370
    %1949 = vmatpush2.bf16.msra.mxu0 %v1369
    %1950 = vmatprep.subr.bf16.mxu0 %v1366
    %1951 = vmatpush2.bf16.msra.mxu0 %v1365
    %1952 = vmatprep.subr.bf16.mxu0 %v1362
    %1953 = vmatpush2.bf16.msra.mxu0 %v1361
    %1954 = vmatprep.subr.bf16.mxu0 %v1358
    %1955 = vmatpush2.bf16.msra.mxu0 %v1357
    %1956 = vmatprep.subr.bf16.mxu0 %v1354
    %1957 = vmatpush2.bf16.msra.mxu0 %v1353
    %1958 = vmatprep.mubr.bf16.mxu0 %v350
    %1959 = vmatmul.mubr.bf16.gmra.mxu0 %v349
    %v1960 = vpop.f32.mrf.mxu0
    %v1961 = vadd.f32 %v1920, %v1960
    %v1962 = vpop.f32.mrf.mxu0
    %v1963 = vadd.f32 %v1922, %v1962
    %v1964 = vpop.f32.mrf.mxu0
    %v1965 = vpop.f32.mrf.mxu0
    %1966 = vdwg.mxu0
    %v1967 = vmax.f32 %v1797, 0.0
    %v1968 = vmax.f32 %v1799, 0.0
    %v1969 = vmax.f32 %v1961, 0.0
    %v1970 = vmax.f32 %v1963, 0.0
    %v1971 = vpack.c.bf16 %v1967, %v1967
    %v1972 = vpack.c.bf16 %v1968, %v1968
    %v1973 = vpack.c.bf16 %v1969, %v1969
    %v1974 = vpack.c.bf16 %v1970, %v1970
    %v1975 = vld [vmem:[#allocation5] sm:$0xff]
    %v1976 = vld [vmem:[#allocation5 + $0x8] sm:$0xff]
    %v1977 = vld [vmem:[#allocation5 + $0x10] sm:$0xff]
    %v1978 = vld [vmem:[#allocation5 + $0x18] sm:$0xff]
    %v1979 = vld [vmem:[#allocation5 + $0x20] sm:$0xff]
    %v1980 = vld [vmem:[#allocation5 + $0x28] sm:$0xff]
    %v1981 = vld [vmem:[#allocation5 + $0x30] sm:$0xff]
    %v1982 = vld [vmem:[#allocation5 + $0x38] sm:$0xff]
    %v1983 = vld [vmem:[#allocation5 + $0x40] sm:$0xff]
    %v1984 = vld [vmem:[#allocation5 + $0x48] sm:$0xff]
    %v1985 = vld [vmem:[#allocation5 + $0x50] sm:$0xff]
    %v1986 = vld [vmem:[#allocation5 + $0x58] sm:$0xff]
    %v1987 = vld [vmem:[#allocation5 + $0x60] sm:$0xff]
    %v1988 = vld [vmem:[#allocation5 + $0x68] sm:$0xff]
    %v1989 = vld [vmem:[#allocation5 + $0x70] sm:$0xff]
    %v1990 = vld [vmem:[#allocation5 + $0x78] sm:$0xff]
    %v1991 = vld [vmem:[#allocation5 + $0x80] sm:$0xff]
    %v1992 = vld [vmem:[#allocation5 + $0x88] sm:$0xff]
    %v1993 = vld [vmem:[#allocation5 + $0x90] sm:$0xff]
    %v1994 = vld [vmem:[#allocation5 + $0x98] sm:$0xff]
    %v1995 = vld [vmem:[#allocation5 + $0xa0] sm:$0xff]
    %v1996 = vld [vmem:[#allocation5 + $0xa8] sm:$0xff]
    %v1997 = vld [vmem:[#allocation5 + $0xb0] sm:$0xff]
    %v1998 = vld [vmem:[#allocation5 + $0xb8] sm:$0xff]
    %v1999 = vld [vmem:[#allocation5 + $0xc0] sm:$0xff]
    %v2000 = vld [vmem:[#allocation5 + $0xc8] sm:$0xff]
    %v2001 = vld [vmem:[#allocation5 + $0xd0] sm:$0xff]
    %v2002 = vld [vmem:[#allocation5 + $0xd8] sm:$0xff]
    %v2003 = vld [vmem:[#allocation5 + $0xe0] sm:$0xff]
    %v2004 = vld [vmem:[#allocation5 + $0xe8] sm:$0xff]
    %v2005 = vld [vmem:[#allocation5 + $0xf0] sm:$0xff]
    %v2006 = vld [vmem:[#allocation5 + $0xf8] sm:$0xff]
    %v2007 = vld [vmem:[#allocation5 + $0x100] sm:$0xff]
    %v2008 = vld [vmem:[#allocation5 + $0x108] sm:$0xff]
    %v2009 = vld [vmem:[#allocation5 + $0x110] sm:$0xff]
    %v2010 = vld [vmem:[#allocation5 + $0x118] sm:$0xff]
    %v2011 = vld [vmem:[#allocation5 + $0x120] sm:$0xff]
    %v2012 = vld [vmem:[#allocation5 + $0x128] sm:$0xff]
    %v2013 = vld [vmem:[#allocation5 + $0x130] sm:$0xff]
    %v2014 = vld [vmem:[#allocation5 + $0x138] sm:$0xff]
    %v2015 = vld [vmem:[#allocation5 + $0x140] sm:$0xff]
    %v2016 = vld [vmem:[#allocation5 + $0x148] sm:$0xff]
    %v2017 = vld [vmem:[#allocation5 + $0x150] sm:$0xff]
    %v2018 = vld [vmem:[#allocation5 + $0x158] sm:$0xff]
    %v2019 = vld [vmem:[#allocation5 + $0x160] sm:$0xff]
    %v2020 = vld [vmem:[#allocation5 + $0x168] sm:$0xff]
    %v2021 = vld [vmem:[#allocation5 + $0x170] sm:$0xff]
    %v2022 = vld [vmem:[#allocation5 + $0x178] sm:$0xff]
    %v2023 = vld [vmem:[#allocation5 + $0x180] sm:$0xff]
    %v2024 = vld [vmem:[#allocation5 + $0x188] sm:$0xff]
    %v2025 = vld [vmem:[#allocation5 + $0x190] sm:$0xff]
    %v2026 = vld [vmem:[#allocation5 + $0x198] sm:$0xff]
    %v2027 = vld [vmem:[#allocation5 + $0x1a0] sm:$0xff]
    %v2028 = vld [vmem:[#allocation5 + $0x1a8] sm:$0xff]
    %v2029 = vld [vmem:[#allocation5 + $0x1b0] sm:$0xff]
    %v2030 = vld [vmem:[#allocation5 + $0x1b8] sm:$0xff]
    %v2031 = vld [vmem:[#allocation5 + $0x1c0] sm:$0xff]
    %v2032 = vld [vmem:[#allocation5 + $0x1c8] sm:$0xff]
    %v2033 = vld [vmem:[#allocation5 + $0x1d0] sm:$0xff]
    %v2034 = vld [vmem:[#allocation5 + $0x1d8] sm:$0xff]
    %v2035 = vld [vmem:[#allocation5 + $0x1e0] sm:$0xff]
    %v2036 = vld [vmem:[#allocation5 + $0x1e8] sm:$0xff]
    %v2037 = vld [vmem:[#allocation5 + $0x1f0] sm:$0xff]
    %v2038 = vld [vmem:[#allocation5 + $0x1f8] sm:$0xff]
    %v2039 = vld [vmem:[%s4] sm:$0x3]
    %v2041 = vlaneseq
    %v2042 = vshrl.u32 %v2041, 7
    %v2043 = vsub.s32 0, %v2042
    %v2044 = vrot.slane %v2039, %v2043
    %v2045 = vlaneseq
    %v2046 = vshrl.u32 %v2045, 7
    %v2047 = vsub.s32 1, %v2046
    %v2048 = vrot.slane %v2039, %v2047
    %v2115 = vunpack.c.l.b16 %v1975
    %v2116 = vunpack.c.h.b16 %v1975
    %v2117 = vunpack.c.l.b16 %v1976
    %v2118 = vunpack.c.h.b16 %v1976
    %v2119 = vunpack.c.l.b16 %v1977
    %v2120 = vunpack.c.h.b16 %v1977
    %v2121 = vunpack.c.l.b16 %v1978
    %v2122 = vunpack.c.h.b16 %v1978
    %v2123 = vunpack.c.l.b16 %v1979
    %v2124 = vunpack.c.h.b16 %v1979
    %v2125 = vunpack.c.l.b16 %v1980
    %v2126 = vunpack.c.h.b16 %v1980
    %v2127 = vunpack.c.l.b16 %v1981
    %v2128 = vunpack.c.h.b16 %v1981
    %v2129 = vunpack.c.l.b16 %v1982
    %v2130 = vunpack.c.h.b16 %v1982
    %v2131 = vunpack.c.l.b16 %v1983
    %v2132 = vunpack.c.h.b16 %v1983
    %v2133 = vunpack.c.l.b16 %v1984
    %v2134 = vunpack.c.h.b16 %v1984
    %v2135 = vunpack.c.l.b16 %v1985
    %v2136 = vunpack.c.h.b16 %v1985
    %v2137 = vunpack.c.l.b16 %v1986
    %v2138 = vunpack.c.h.b16 %v1986
    %v2139 = vunpack.c.l.b16 %v1987
    %v2140 = vunpack.c.h.b16 %v1987
    %v2141 = vunpack.c.l.b16 %v1988
    %v2142 = vunpack.c.h.b16 %v1988
    %v2143 = vunpack.c.l.b16 %v1989
    %v2144 = vunpack.c.h.b16 %v1989
    %v2145 = vunpack.c.l.b16 %v1990
    %v2146 = vunpack.c.h.b16 %v1990
    %v2147 = vunpack.c.l.b16 %v1991
    %v2148 = vunpack.c.h.b16 %v1991
    %v2149 = vunpack.c.l.b16 %v1992
    %v2150 = vunpack.c.h.b16 %v1992
    %v2151 = vunpack.c.l.b16 %v1993
    %v2152 = vunpack.c.h.b16 %v1993
    %v2153 = vunpack.c.l.b16 %v1994
    %v2154 = vunpack.c.h.b16 %v1994
    %v2155 = vunpack.c.l.b16 %v1995
    %v2156 = vunpack.c.h.b16 %v1995
    %v2157 = vunpack.c.l.b16 %v1996
    %v2158 = vunpack.c.h.b16 %v1996
    %v2159 = vunpack.c.l.b16 %v1997
    %v2160 = vunpack.c.h.b16 %v1997
    %v2161 = vunpack.c.l.b16 %v1998
    %v2162 = vunpack.c.h.b16 %v1998
    %v2163 = vunpack.c.l.b16 %v1999
    %v2164 = vunpack.c.h.b16 %v1999
    %v2165 = vunpack.c.l.b16 %v2000
    %v2166 = vunpack.c.h.b16 %v2000
    %v2167 = vunpack.c.l.b16 %v2001
    %v2168 = vunpack.c.h.b16 %v2001
    %v2169 = vunpack.c.l.b16 %v2002
    %v2170 = vunpack.c.h.b16 %v2002
    %v2171 = vunpack.c.l.b16 %v2003
    %v2172 = vunpack.c.h.b16 %v2003
    %v2173 = vunpack.c.l.b16 %v2004
    %v2174 = vunpack.c.h.b16 %v2004
    %v2175 = vunpack.c.l.b16 %v2005
    %v2176 = vunpack.c.h.b16 %v2005
    %v2177 = vunpack.c.l.b16 %v2006
    %v2178 = vunpack.c.h.b16 %v2006
    %v2179 = vunpack.c.l.b16 %v2007
    %v2180 = vunpack.c.h.b16 %v2007
    %v2181 = vunpack.c.l.b16 %v2008
    %v2182 = vunpack.c.h.b16 %v2008
    %v2183 = vunpack.c.l.b16 %v2009
    %v2184 = vunpack.c.h.b16 %v2009
    %v2185 = vunpack.c.l.b16 %v2010
    %v2186 = vunpack.c.h.b16 %v2010
    %v2187 = vunpack.c.l.b16 %v2011
    %v2188 = vunpack.c.h.b16 %v2011
    %v2189 = vunpack.c.l.b16 %v2012
    %v2190 = vunpack.c.h.b16 %v2012
    %v2191 = vunpack.c.l.b16 %v2013
    %v2192 = vunpack.c.h.b16 %v2013
    %v2193 = vunpack.c.l.b16 %v2014
    %v2194 = vunpack.c.h.b16 %v2014
    %v2195 = vunpack.c.l.b16 %v2015
    %v2196 = vunpack.c.h.b16 %v2015
    %v2197 = vunpack.c.l.b16 %v2016
    %v2198 = vunpack.c.h.b16 %v2016
    %v2199 = vunpack.c.l.b16 %v2017
    %v2200 = vunpack.c.h.b16 %v2017
    %v2201 = vunpack.c.l.b16 %v2018
    %v2202 = vunpack.c.h.b16 %v2018
    %v2203 = vunpack.c.l.b16 %v2019
    %v2204 = vunpack.c.h.b16 %v2019
    %v2205 = vunpack.c.l.b16 %v2020
    %v2206 = vunpack.c.h.b16 %v2020
    %v2207 = vunpack.c.l.b16 %v2021
    %v2208 = vunpack.c.h.b16 %v2021
    %v2209 = vunpack.c.l.b16 %v2022
    %v2210 = vunpack.c.h.b16 %v2022
    %v2211 = vunpack.c.l.b16 %v2023
    %v2212 = vunpack.c.h.b16 %v2023
    %v2213 = vunpack.c.l.b16 %v2024
    %v2214 = vunpack.c.h.b16 %v2024
    %v2215 = vunpack.c.l.b16 %v2025
    %v2216 = vunpack.c.h.b16 %v2025
    %v2217 = vunpack.c.l.b16 %v2026
    %v2218 = vunpack.c.h.b16 %v2026
    %v2219 = vunpack.c.l.b16 %v2027
    %v2220 = vunpack.c.h.b16 %v2027
    %v2221 = vunpack.c.l.b16 %v2028
    %v2222 = vunpack.c.h.b16 %v2028
    %v2223 = vunpack.c.l.b16 %v2029
    %v2224 = vunpack.c.h.b16 %v2029
    %v2225 = vunpack.c.l.b16 %v2030
    %v2226 = vunpack.c.h.b16 %v2030
    %v2227 = vunpack.c.l.b16 %v2031
    %v2228 = vunpack.c.h.b16 %v2031
    %v2229 = vunpack.c.l.b16 %v2032
    %v2230 = vunpack.c.h.b16 %v2032
    %v2231 = vunpack.c.l.b16 %v2033
    %v2232 = vunpack.c.h.b16 %v2033
    %v2233 = vunpack.c.l.b16 %v2034
    %v2234 = vunpack.c.h.b16 %v2034
    %v2235 = vunpack.c.l.b16 %v2035
    %v2236 = vunpack.c.h.b16 %v2035
    %v2237 = vunpack.c.l.b16 %v2036
    %v2238 = vunpack.c.h.b16 %v2036
    %v2239 = vunpack.c.l.b16 %v2037
    %v2240 = vunpack.c.h.b16 %v2037
    %v2241 = vunpack.c.l.b16 %v2038
    %v2242 = vunpack.c.h.b16 %v2038
    %v2243 = vpack.c.b16 %v2117, %v2115
    %v2244 = vpack.c.b16 %v2118, %v2116
    %v2245 = vpack.c.b16 %v2121, %v2119
    %v2246 = vpack.c.b16 %v2122, %v2120
    %v2247 = vpack.c.b16 %v2125, %v2123
    %v2248 = vpack.c.b16 %v2126, %v2124
    %v2249 = vpack.c.b16 %v2129, %v2127
    %v2250 = vpack.c.b16 %v2130, %v2128
    %v2251 = vpack.c.b16 %v2133, %v2131
    %v2252 = vpack.c.b16 %v2134, %v2132
    %v2253 = vpack.c.b16 %v2137, %v2135
    %v2254 = vpack.c.b16 %v2138, %v2136
    %v2255 = vpack.c.b16 %v2141, %v2139
    %v2256 = vpack.c.b16 %v2142, %v2140
    %v2257 = vpack.c.b16 %v2145, %v2143
    %v2258 = vpack.c.b16 %v2146, %v2144
    %v2259 = vpack.c.b16 %v2149, %v2147
    %v2260 = vpack.c.b16 %v2150, %v2148
    %v2261 = vpack.c.b16 %v2153, %v2151
    %v2262 = vpack.c.b16 %v2154, %v2152
    %v2263 = vpack.c.b16 %v2157, %v2155
    %v2264 = vpack.c.b16 %v2158, %v2156
    %v2265 = vpack.c.b16 %v2161, %v2159
    %v2266 = vpack.c.b16 %v2162, %v2160
    %v2267 = vpack.c.b16 %v2165, %v2163
    %v2268 = vpack.c.b16 %v2166, %v2164
    %v2269 = vpack.c.b16 %v2169, %v2167
    %v2270 = vpack.c.b16 %v2170, %v2168
    %v2271 = vpack.c.b16 %v2173, %v2171
    %v2272 = vpack.c.b16 %v2174, %v2172
    %v2273 = vpack.c.b16 %v2177, %v2175
    %v2274 = vpack.c.b16 %v2178, %v2176
    %v2275 = vpack.c.b16 %v2181, %v2179
    %v2276 = vpack.c.b16 %v2182, %v2180
    %v2277 = vpack.c.b16 %v2185, %v2183
    %v2278 = vpack.c.b16 %v2186, %v2184
    %v2279 = vpack.c.b16 %v2189, %v2187
    %v2280 = vpack.c.b16 %v2190, %v2188
    %v2281 = vpack.c.b16 %v2193, %v2191
    %v2282 = vpack.c.b16 %v2194, %v2192
    %v2283 = vpack.c.b16 %v2197, %v2195
    %v2284 = vpack.c.b16 %v2198, %v2196
    %v2285 = vpack.c.b16 %v2201, %v2199
    %v2286 = vpack.c.b16 %v2202, %v2200
    %v2287 = vpack.c.b16 %v2205, %v2203
    %v2288 = vpack.c.b16 %v2206, %v2204
    %v2289 = vpack.c.b16 %v2209, %v2207
    %v2290 = vpack.c.b16 %v2210, %v2208
    %v2291 = vpack.c.b16 %v2213, %v2211
    %v2292 = vpack.c.b16 %v2214, %v2212
    %v2293 = vpack.c.b16 %v2217, %v2215
    %v2294 = vpack.c.b16 %v2218, %v2216
    %v2295 = vpack.c.b16 %v2221, %v2219
    %v2296 = vpack.c.b16 %v2222, %v2220
    %v2297 = vpack.c.b16 %v2225, %v2223
    %v2298 = vpack.c.b16 %v2226, %v2224
    %v2299 = vpack.c.b16 %v2229, %v2227
    %v2300 = vpack.c.b16 %v2230, %v2228
    %v2301 = vpack.c.b16 %v2233, %v2231
    %v2302 = vpack.c.b16 %v2234, %v2232
    %v2303 = vpack.c.b16 %v2237, %v2235
    %v2304 = vpack.c.b16 %v2238, %v2236
    %v2305 = vpack.c.b16 %v2241, %v2239
    %v2306 = vpack.c.b16 %v2242, %v2240
    %2371 = vmatprep.subr.bf16.mxu0 %v2258
    %2372 = vmatpush1.bf16.msra.mxu0 %v2257
    %2373 = vmatprep.subr.bf16.mxu0 %v2256
    %2374 = vmatpush1.bf16.msra.mxu0 %v2255
    %2375 = vmatprep.subr.bf16.mxu0 %v2254
    %2376 = vmatpush1.bf16.msra.mxu0 %v2253
    %2377 = vmatprep.subr.bf16.mxu0 %v2252
    %2378 = vmatpush1.bf16.msra.mxu0 %v2251
    %2379 = vmatprep.subr.bf16.mxu0 %v2250
    %2380 = vmatpush1.bf16.msra.mxu0 %v2249
    %2381 = vmatprep.subr.bf16.mxu0 %v2248
    %2382 = vmatpush1.bf16.msra.mxu0 %v2247
    %2383 = vmatprep.subr.bf16.mxu0 %v2246
    %2384 = vmatpush1.bf16.msra.mxu0 %v2245
    %2385 = vmatprep.subr.bf16.mxu0 %v2244
    %2386 = vmatpush1.bf16.msra.mxu0 %v2243
    %2387 = vmatprep.subr.bf16.mxu0 %v2274
    %2388 = vmatpush2.bf16.msra.mxu0 %v2273
    %2389 = vmatprep.subr.bf16.mxu0 %v2272
    %2390 = vmatpush2.bf16.msra.mxu0 %v2271
    %2391 = vmatprep.subr.bf16.mxu0 %v2270
    %2392 = vmatpush2.bf16.msra.mxu0 %v2269
    %2393 = vmatprep.subr.bf16.mxu0 %v2268
    %2394 = vmatpush2.bf16.msra.mxu0 %v2267
    %2395 = vmatprep.subr.bf16.mxu0 %v2266
    %2396 = vmatpush2.bf16.msra.mxu0 %v2265
    %2397 = vmatprep.subr.bf16.mxu0 %v2264
    %2398 = vmatpush2.bf16.msra.mxu0 %v2263
    %2399 = vmatprep.subr.bf16.mxu0 %v2262
    %2400 = vmatpush2.bf16.msra.mxu0 %v2261
    %2401 = vmatprep.subr.bf16.mxu0 %v2260
    %2402 = vmatpush2.bf16.msra.mxu0 %v2259
    %2403 = vmatprep.mubr.bf16.mxu0 %v1972
    %2404 = vmatmul.mubr.bf16.gmra.mxu0 %v1971
    %v2405 = vpop.f32.mrf.mxu0
    %v2406 = vadd.f32 %v2044, %v2405
    %v2407 = vpop.f32.mrf.mxu0
    %v2408 = vadd.f32 %v2048, %v2407
    %v2409 = vpop.f32.mrf.mxu0
    %v2410 = vpop.f32.mrf.mxu0
    %2411 = vdwg.mxu0
    %2412 = vmatprep.subr.bf16.mxu0 %v2290
    %2413 = vmatpush1.bf16.msra.mxu0 %v2289
    %2414 = vmatprep.subr.bf16.mxu0 %v2288
    %2415 = vmatpush1.bf16.msra.mxu0 %v2287
    %2416 = vmatprep.subr.bf16.mxu0 %v2286
    %2417 = vmatpush1.bf16.msra.mxu0 %v2285
    %2418 = vmatprep.subr.bf16.mxu0 %v2284
    %2419 = vmatpush1.bf16.msra.mxu0 %v2283
    %2420 = vmatprep.subr.bf16.mxu0 %v2282
    %2421 = vmatpush1.bf16.msra.mxu0 %v2281
    %2422 = vmatprep.subr.bf16.mxu0 %v2280
    %2423 = vmatpush1.bf16.msra.mxu0 %v2279
    %2424 = vmatprep.subr.bf16.mxu0 %v2278
    %2425 = vmatpush1.bf16.msra.mxu0 %v2277
    %2426 = vmatprep.subr.bf16.mxu0 %v2276
    %2427 = vmatpush1.bf16.msra.mxu0 %v2275
    %2428 = vmatprep.subr.bf16.mxu0 %v2306
    %2429 = vmatpush2.bf16.msra.mxu0 %v2305
    %2430 = vmatprep.subr.bf16.mxu0 %v2304
    %2431 = vmatpush2.bf16.msra.mxu0 %v2303
    %2432 = vmatprep.subr.bf16.mxu0 %v2302
    %2433 = vmatpush2.bf16.msra.mxu0 %v2301
    %2434 = vmatprep.subr.bf16.mxu0 %v2300
    %2435 = vmatpush2.bf16.msra.mxu0 %v2299
    %2436 = vmatprep.subr.bf16.mxu0 %v2298
    %2437 = vmatpush2.bf16.msra.mxu0 %v2297
    %2438 = vmatprep.subr.bf16.mxu0 %v2296
    %2439 = vmatpush2.bf16.msra.mxu0 %v2295
    %2440 = vmatprep.subr.bf16.mxu0 %v2294
    %2441 = vmatpush2.bf16.msra.mxu0 %v2293
    %2442 = vmatprep.subr.bf16.mxu0 %v2292
    %2443 = vmatpush2.bf16.msra.mxu0 %v2291
    %2444 = vmatprep.mubr.bf16.mxu0 %v1974
    %2445 = vmatmul.mubr.bf16.gmra.mxu0 %v1973
    %v2446 = vpop.f32.mrf.mxu0
    %v2447 = vadd.f32 %v2406, %v2446
    %v2448 = vpop.f32.mrf.mxu0
    %v2449 = vadd.f32 %v2408, %v2448
    %v2450 = vpop.f32.mrf.mxu0
    %v2451 = vpop.f32.mrf.mxu0
    %2452 = vdwg.mxu0
    %v2453 = vmax.f32 %v2447, 0.0
    %v2454 = vmax.f32 %v2449, 0.0
    %2455 = vst [vmem:[#allocation7] sm:$0xff] %v2453
    %2456 = vst [vmem:[#allocation7 + $0x8] sm:$0xff] %v2454
    // Predicated region
    $region30: #{head_projection.1} parent=1 // pred_check
      _
    $region31: #{head_projection.1} parent=1 // pred_check_branch
      %2458 = sbr.rel (0) target = $region33
    $region32: #{head_projection.1} parent=1 // pred_region
      %s2460 = ssub.s32 256, 256
      %2461 = vsyncadd [#allocation4], %s2460
      %s2463 = sshll.u32 [#allocation7], 4
      %s2464 = int_to_ptr.vmem [resolvable:$true] %s2463
      %2466 = dma.vmem_to_hbm [thread:$0]  %s2464, 256, %s5, [#allocation4]
    $region33: #{head_projection.1} parent=1 // pred_fallthru
      _
    // Predicated region
    $region34: #{head_projection.1} parent=1 // pred_check
      _
    $region35: #{head_projection.1} parent=1 // pred_check_branch
      %2468 = sbr.rel (0) target = $region37
    $region36: #{head_projection.1} parent=1 // pred_region
      %2469 = dma.done [#allocation4], 256
    $region37: #{head_projection.1} parent=1 // pred_fallthru
      _
    %2470 = vsyncpa [#allocation3], 1
    %2471 = vsyncpa [#allocation6], 1
    %2472 = vsyncpa [#allocation4], 1

</llo_original>
